<compile_context>
chip_gen: v7x
topology: tpu7x:2x2x1
jax: 0.10.0
libtpu: 0.0.40
codegen_flags: <defaults>
</compile_context>

<pallas_src>
import functools

import jax
import jax.numpy as jnp
from jax.experimental import pallas as pl
from jax.experimental.pallas import tpu as pltpu


def attention_conv_kernel(x_ref, w_ref, rel_ref, mask_ref, o_ref, logit_ref, *,
                          K, W, HWp, pad, Cb):
    """One (batch, output-channel block) tile per grid step.

    x_ref     : (Cin, HWp)     input image, channel-major, spatial flattened
    w_ref     : (3*Cb, Cin)    fused [q; k; v] 1x1-conv weights for this block
    rel_ref   : (Cb, K*K)      relative positional embedding (lane-dense)
    mask_ref  : (K*K, 1, HWp)  1.0 inside the image, 0.0 in the zero padding
    o_ref     : (Cb, HWp)
    logit_ref : (K*K, Cb, HWp) f32 scratch - cached logits for the 2-pass softmax
    """
    # Fused 1x1 convolutions == one MXU matmul, f32 accumulate.
    qkv = jnp.dot(w_ref[...], x_ref[...], preferred_element_type=jnp.float32)
    q = qkv[0:Cb, :]
    k = qkv[Cb:2 * Cb, :]
    v = qkv[2 * Cb:3 * Cb, :]
    rel_all = rel_ref[...].astype(jnp.float32)          # (Cb, KK)

    # ---- Pass 1: logits (stored to scratch) + running max ------------------
    m = None
    for i in range(K):            # window row offset (rel_h direction)
        for j in range(K):        # window col offset (rel_w direction)
            idx = i * K + j
            s = (i - pad) * W + (j - pad)          # flat source shift
            shift = (-s) % HWp                     # jnp.roll-style shift
            rel = rel_all[:, idx:idx + 1]          # (Cb, 1), lane-broadcasts
            if shift == 0:
                k_s = k
            else:
                # Lane rotation on the XLU; wrapped lanes are masked below.
                k_s = pltpu.roll(k, shift, 1)
            if i == pad and j == pad:
                k_win = k_s                        # center: mask is all-ones
            else:
                k_win = k_s * mask_ref[idx]        # 0 where window hits padding
            logit = q * (k_win + rel)
            logit_ref[idx] = logit
            m = logit if m is None else jnp.maximum(m, logit)

    # ---- Pass 2: one exp per logit; accumulate l and e*v_win ---------------
    l = None
    acc = None
    for i in range(K):
        for j in range(K):
            idx = i * K + j
            s = (i - pad) * W + (j - pad)
            shift = (-s) % HWp
            e = jnp.exp(logit_ref[idx] - m)
            if shift == 0:
                v_s = v
            else:
                v_s = pltpu.roll(v, shift, 1)
            if i == pad and j == pad:
                ev = e * v_s                       # center: mask is all-ones
            else:
                # e (unmasked) goes into the denominator: padded positions
                # contribute logit=q*rel with v=0, matching the torch module.
                ev = (e * mask_ref[idx]) * v_s
            if l is None:
                l, acc = e, ev
            else:
                l = l + e
                acc = acc + ev

    # EUP reciprocal + one Newton refinement (keeps 1e-4 tolerance).
    inv = pl.reciprocal(l, approx=True)
    inv = inv * (2.0 - l * inv)
    o_ref[...] = (acc * inv).astype(o_ref.dtype)


def attention_conv(x_nchw, wq, wk, wv, rel_h, rel_w, *,
                   kernel_size, stride=1, padding=0, groups=1,
                   channel_block=None):
    """x_nchw: (B, Cin, H, W). wq/wk/wv: (Cout, Cin, 1, 1) torch-style.
    rel_h: (Cout//2, 1, 1, K, 1), rel_w: (Cout//2, 1, 1, 1, K).
    Returns (B, Cout, H, W)."""
    B, Cin, H, W = x_nchw.shape
    Cout = wq.shape[0]
    K = kernel_size
    KK = K * K
    assert Cout % groups == 0            # groups only reshape; math unchanged
    assert Cout % 2 == 0
    # The torch module's final .view() requires the unfolded spatial size to
    # equal (H, W): stride == 1 and padding == (K - 1) // 2.
    assert stride == 1
    assert H + 2 * padding - K + 1 == H
    assert W + 2 * padding - K + 1 == W

    HW = H * W
    HWp = ((HW + 127) // 128) * 128      # lane-dense flattened spatial axis
    out_bytes = jnp.dtype(x_nchw.dtype).itemsize

    # Per-generation VMEM budget (v5e/v6e 128 MiB, v7x 64 MiB).
    try:
        info = pltpu.get_tpu_info()
        vmem_cap = getattr(info, "vmem_capacity_bytes", None) or (64 << 20)
    except Exception:  # conservative fallback
        vmem_cap = 64 << 20
    vmem_budget = max(32 << 20, min(int(vmem_cap) * 3 // 4, 96 << 20))

    def est_vmem(cb):
        # Padded VMEM tile bytes (8 sublanes x 128 lanes).
        def tile(r, c, b=4):
            return (-(-r // 8) * 8) * (-(-c // 128) * 128) * b
        return (2 * tile(Cin, HWp)             # x, double-buffered
                + 2 * tile(3 * cb, Cin)        # fused weights
                + 2 * tile(cb, KK)             # rel table
                + 2 * KK * tile(1, HWp)        # padding masks
                + 2 * tile(cb, HWp, out_bytes)  # output
                + KK * tile(cb, HWp)           # logit scratch
                + 8 * tile(cb, HWp))           # qkv + m/l/acc + temporaries

    # Output-channel blocking: second "parallel" grid axis (no halo needed,
    # channels are independent since the softmax is per-channel).  Pick the
    # largest block that fits the per-generation VMEM budget.
    if channel_block is None:
        cands = [c for c in (256, 128, 64, 32, 16, 8) if Cout % c == 0]
        if not cands:
            channel_block = Cout
        else:
            channel_block = next((c for c in cands if est_vmem(c) <= vmem_budget),
                                 cands[-1])
    Cb = channel_block
    assert Cout % Cb == 0
    ncb = Cout // Cb

    # Flatten spatial onto the lane axis (free reshape; no transpose); pad the
    # tail so every big block is lane-dense (full-width vst, no vst.msk).
    x_flat = x_nchw.reshape(B, Cin, HW)
    if HWp != HW:
        x_flat = jnp.pad(x_flat, ((0, 0), (0, 0), (0, HWp - HW)))

    # Fused per-block [q; k; v] weights: (ncb, 3*Cb, Cin).
    wq2 = wq.reshape(Cout, Cin)
    wk2 = wk.reshape(Cout, Cin)
    wv2 = wv.reshape(Cout, Cin)
    w_blocked = jnp.concatenate(
        [wq2.reshape(ncb, Cb, Cin),
         wk2.reshape(ncb, Cb, Cin),
         wv2.reshape(ncb, Cb, Cin)], axis=1)

    # Relative positional embedding table: rel[c, i*K+j] =
    #   rel_h[c, i]          for c <  Cout//2   (varies with window row)
    #   rel_w[c-Cout//2, j]  for c >= Cout//2   (varies with window col)
    # Shipped lane-dense as (ncb, Cb, KK).
    Ch = Cout // 2
    relh = rel_h.reshape(Ch, K).astype(jnp.float32)     # [c, i]
    relw = rel_w.reshape(Ch, K).astype(jnp.float32)     # [c, j]
    rel_top = jnp.broadcast_to(relh[:, :, None], (Ch, K, K))
    rel_bot = jnp.broadcast_to(relw[:, None, :], (Ch, K, K))
    rel_ck = jnp.concatenate([rel_top, rel_bot], axis=0).reshape(Cout, KK)
    rel_blocked = rel_ck.reshape(ncb, Cb, KK)

    # Validity masks: 1.0 where window position (i, j) lands inside the image,
    # 0.0 where it falls in the zero padding (conv(0) == 0 since bias=False).
    off = jnp.arange(K) - padding
    h_idx = jnp.arange(H)
    w_idx = jnp.arange(W)
    vh = ((h_idx[None, :] + off[:, None]) >= 0) & \
         ((h_idx[None, :] + off[:, None]) < H)          # (K, H)
    vw = ((w_idx[None, :] + off[:, None]) >= 0) & \
         ((w_idx[None, :] + off[:, None]) < W)          # (K, W)
    masks = (vh[:, None, :, None] & vw[None, :, None, :]).reshape(KK, 1, HW)
    masks = masks.astype(jnp.float32)
    if HWp != HW:
        masks = jnp.pad(masks, ((0, 0), (0, 0), (0, HWp - HW)))

    kernel = functools.partial(attention_conv_kernel,
                               K=K, W=W, HWp=HWp, pad=padding, Cb=Cb)

    # Advisory cost estimate so XLA schedules around the custom call.
    flops = B * ncb * 2 * (3 * Cb) * Cin * HWp + B * Cout * HWp * 12 * KK
    transcendentals = B * Cout * HWp * KK
    bytes_accessed = (B * ncb * Cin * HWp * 4 + 3 * Cout * Cin * 4
                      + Cout * KK * 4 + KK * HWp * 4
                      + B * Cout * HWp * out_bytes)
    cost = pl.CostEstimate(flops=int(flops),
                           transcendentals=int(transcendentals),
                           bytes_accessed=int(bytes_accessed))

    out_flat = pl.pallas_call(
        kernel,
        out_shape=jax.ShapeDtypeStruct((B, Cout, HWp), x_nchw.dtype),
        grid_spec=pltpu.PrefetchScalarGridSpec(
            num_scalar_prefetch=0,
            grid=(B, ncb),
            in_specs=[
                pl.BlockSpec((None, Cin, HWp), lambda b, cb: (b, 0, 0)),
                pl.BlockSpec((None, 3 * Cb, Cin), lambda b, cb: (cb, 0, 0)),
                pl.BlockSpec((None, Cb, KK), lambda b, cb: (cb, 0, 0)),
                pl.BlockSpec((KK, 1, HWp), lambda b, cb: (0, 0, 0)),
            ],
            out_specs=pl.BlockSpec((None, Cb, HWp), lambda b, cb: (b, cb, 0)),
            scratch_shapes=[pltpu.VMEM((KK, Cb, HWp), jnp.float32)],
        ),
        compiler_params=pltpu.CompilerParams(
            dimension_semantics=("parallel", "parallel"),
            vmem_limit_bytes=int(vmem_budget)),
        cost_estimate=cost,
    )(x_flat, w_blocked, rel_blocked, masks)

    return out_flat[..., :HW].reshape(B, Cout, H, W)


def reference_attention_conv(x, wq, wk, wv, rel_h, rel_w, *,
                             kernel_size, stride, padding, groups):
    """Pure-JAX re-implementation of the torch forward (NCHW), for checking."""
    B, Cin, H, W = x.shape
    Cout = wq.shape[0]
    K = kernel_size
    xp = jnp.pad(x, ((0, 0), (0, 0), (padding, padding), (padding, padding)))
    q = jnp.einsum('bchw,oc->bohw', x, wq.reshape(Cout, Cin))
    k = jnp.einsum('bchw,oc->bohw', xp, wk.reshape(Cout, Cin))
    v = jnp.einsum('bchw,oc->bohw', xp, wv.reshape(Cout, Cin))

    def unfold(a):  # (B, C, Hp, Wp) -> (B, C, H, W, K, K)
        rows = []
        for i in range(K):
            cols = []
            for j in range(K):
                cols.append(a[:, :, i:i + (H - 1) * stride + 1:stride,
                              j:j + (W - 1) * stride + 1:stride])
            rows.append(jnp.stack(cols, axis=-1))
        return jnp.stack(rows, axis=-2)

    k_u = unfold(k)
    v_u = unfold(v)
    kh = k_u[:, :Cout // 2] + rel_h[None]
    kw = k_u[:, Cout // 2:] + rel_w[None]
    k_u = jnp.concatenate([kh, kw], axis=1)

    k_u = k_u.reshape(B, Cout, H, W, K * K)
    v_u = v_u.reshape(B, Cout, H, W, K * K)
    logits = q[..., None] * k_u
    attn = jax.nn.softmax(logits, axis=-1)
    return jnp.sum(attn * v_u, axis=-1)                           # (B, Cout, H, W)


if __name__ == "__main__":
    # Module config (padding chosen so unfolded spatial == input spatial,
    # as the torch forward's .view() requires).
    in_channels, out_channels = 8, 32
    kernel_size, stride, padding, groups = 3, 1, 1, 4
    B, H, W = 2, 16, 16

    key = jax.random.PRNGKey(0)
    kx, kq, kk, kv, krh, krw = jax.random.split(key, 6)

    x = jax.random.normal(kx, (B, in_channels, H, W), dtype=jnp.float32)
    # Deterministic synthetic parameters (torch shapes), bias=False.
    wq = jax.random.normal(kq, (out_channels, in_channels, 1, 1), jnp.float32) * 0.2
    wk = jax.random.normal(kk, (out_channels, in_channels, 1, 1), jnp.float32) * 0.2
    wv = jax.random.normal(kv, (out_channels, in_channels, 1, 1), jnp.float32) * 0.2
    rel_h = jax.random.normal(krh, (out_channels // 2, 1, 1, kernel_size, 1), jnp.float32)
    rel_w = jax.random.normal(krw, (out_channels // 2, 1, 1, 1, kernel_size), jnp.float32)

    out = attention_conv(x, wq, wk, wv, rel_h, rel_w,
                         kernel_size=kernel_size, stride=stride,
                         padding=padding, groups=groups)
    out = jax.block_until_ready(out)

    ref = reference_attention_conv(x, wq, wk, wv, rel_h, rel_w,
                                   kernel_size=kernel_size, stride=stride,
                                   padding=padding, groups=groups)
    ref = jax.block_until_ready(ref)

    assert out.shape == (B, out_channels, H, W), out.shape
    assert jnp.allclose(out, ref, atol=1e-4, rtol=1e-4), \
        float(jnp.max(jnp.abs(out - ref)))

    print("KERNEL_OK")
</pallas_src>

<mosaic_0001>
module attributes {stable_mosaic.version = 11 : i64} {
  func.func @attention_conv_kernel(%arg0: i32, %arg1: i32, %arg2: memref<1x8x256xf32, #tpu.memory_space<vmem>>, %arg3: memref<1x96x8xf32, #tpu.memory_space<vmem>>, %arg4: memref<1x32x9xf32, #tpu.memory_space<vmem>>, %arg5: memref<9x1x256xf32, #tpu.memory_space<vmem>>, %arg6: memref<1x32x256xf32, #tpu.memory_space<vmem>>, %arg7: memref<9x32x256xf32, #tpu.memory_space<vmem>>) attributes {dimension_semantics = [#tpu.dimension_semantics<parallel>, #tpu.dimension_semantics<parallel>], iteration_bounds = array<i64: 2, 1>, scalar_prefetch = 0 : i64, scratch_operands = 1 : i64, tpu.core_type = #tpu.core_type<tc>, window_params = [{transform_indices = @transform_0, window_bounds = array<i64: 1, 8, 256>}, {transform_indices = @transform_1, window_bounds = array<i64: 1, 96, 8>}, {transform_indices = @transform_2, window_bounds = array<i64: 1, 32, 9>}, {pipeline_mode = #tpu.pipeline_mode<synchronous>, transform_indices = @transform_3, window_bounds = array<i64: 9, 1, 256>}, {transform_indices = @transform_4, window_bounds = array<i64: 1, 32, 256>}]} {
    %c0 = arith.constant 0 : index
    %c0_0 = arith.constant 0 : index
    %c0_1 = arith.constant 0 : index
    %0 = vector.load %arg3[%c0, %c0_0, %c0_1] : memref<1x96x8xf32, #tpu.memory_space<vmem>>, vector<1x96x8xf32>
    %1 = vector.shape_cast %0 : vector<1x96x8xf32> to vector<96x8xf32>
    %c0_2 = arith.constant 0 : index
    %c0_3 = arith.constant 0 : index
    %c0_4 = arith.constant 0 : index
    %2 = vector.load %arg2[%c0_2, %c0_3, %c0_4] : memref<1x8x256xf32, #tpu.memory_space<vmem>>, vector<1x8x256xf32>
    %3 = vector.shape_cast %2 : vector<1x8x256xf32> to vector<8x256xf32>
    %cst = arith.constant dense<0.000000e+00> : vector<96x256xf32>
    %4 = tpu.matmul %1, %3, %cst {dimension_numbers = #tpu.dot_dimension_numbers<[1], [0], [0], [1], [0, 0, 1, 1], [], []>} : vector<96x8xf32>, vector<8x256xf32>, vector<96x256xf32> -> vector<96x256xf32>
    %5 = vector.extract_strided_slice %4 {offsets = [0, 0], sizes = [32, 256], strides = [1, 1]} : vector<96x256xf32> to vector<32x256xf32>
    %6 = vector.extract_strided_slice %4 {offsets = [32, 0], sizes = [32, 256], strides = [1, 1]} : vector<96x256xf32> to vector<32x256xf32>
    %7 = vector.extract_strided_slice %4 {offsets = [64, 0], sizes = [32, 256], strides = [1, 1]} : vector<96x256xf32> to vector<32x256xf32>
    %c0_5 = arith.constant 0 : index
    %c0_6 = arith.constant 0 : index
    %c0_7 = arith.constant 0 : index
    %8 = vector.load %arg4[%c0_5, %c0_6, %c0_7] : memref<1x32x9xf32, #tpu.memory_space<vmem>>, vector<1x32x9xf32>
    %9 = vector.shape_cast %8 : vector<1x32x9xf32> to vector<32x9xf32>
    %10 = vector.extract_strided_slice %9 {offsets = [0, 0], sizes = [32, 1], strides = [1, 1]} : vector<32x9xf32> to vector<32x1xf32>
    %c17_i32 = arith.constant 17 : i32
    %11 = tpu.dynamic_rotate %6 by %c17_i32 dim 1 : vector<32x256xf32>, i32 -> vector<32x256xf32>
    %c0_8 = arith.constant 0 : index
    %c0_9 = arith.constant 0 : index
    %c0_10 = arith.constant 0 : index
    %12 = vector.load %arg5[%c0_8, %c0_9, %c0_10] : memref<9x1x256xf32, #tpu.memory_space<vmem>>, vector<1x1x256xf32>
    %13 = vector.shape_cast %12 : vector<1x1x256xf32> to vector<1x256xf32>
    %14 = vector.broadcast %13 : vector<1x256xf32> to vector<32x256xf32>
    %15 = arith.mulf %11, %14 : vector<32x256xf32>
    %16 = vector.broadcast %10 : vector<32x1xf32> to vector<32x256xf32>
    %17 = arith.addf %15, %16 : vector<32x256xf32>
    %18 = arith.mulf %5, %17 : vector<32x256xf32>
    %c0_11 = arith.constant 0 : index
    %c0_12 = arith.constant 0 : index
    %c0_13 = arith.constant 0 : index
    %19 = vector.load %arg7[%c0_11, %c0_12, %c0_13] : memref<9x32x256xf32, #tpu.memory_space<vmem>>, vector<1x32x256xf32>
    %20 = vector.shape_cast %19 : vector<1x32x256xf32> to vector<32x256xf32>
    %21 = vector.shape_cast %18 : vector<32x256xf32> to vector<1x32x256xf32>
    tpu.vector_store %arg7[%c0_11, %c0_12, %c0_13], %21 {strides = array<i32>} : memref<9x32x256xf32, #tpu.memory_space<vmem>>, vector<1x32x256xf32>,
    %22 = vector.extract_strided_slice %9 {offsets = [0, 1], sizes = [32, 1], strides = [1, 1]} : vector<32x9xf32> to vector<32x1xf32>
    %c16_i32 = arith.constant 16 : i32
    %23 = tpu.dynamic_rotate %6 by %c16_i32 dim 1 : vector<32x256xf32>, i32 -> vector<32x256xf32>
    %c1 = arith.constant 1 : index
    %c0_14 = arith.constant 0 : index
    %c0_15 = arith.constant 0 : index
    %24 = vector.load %arg5[%c1, %c0_14, %c0_15] : memref<9x1x256xf32, #tpu.memory_space<vmem>>, vector<1x1x256xf32>
    %25 = vector.shape_cast %24 : vector<1x1x256xf32> to vector<1x256xf32>
    %26 = vector.broadcast %25 : vector<1x256xf32> to vector<32x256xf32>
    %27 = arith.mulf %23, %26 : vector<32x256xf32>
    %28 = vector.broadcast %22 : vector<32x1xf32> to vector<32x256xf32>
    %29 = arith.addf %27, %28 : vector<32x256xf32>
    %30 = arith.mulf %5, %29 : vector<32x256xf32>
    %c1_16 = arith.constant 1 : index
    %c0_17 = arith.constant 0 : index
    %c0_18 = arith.constant 0 : index
    %31 = vector.load %arg7[%c1_16, %c0_17, %c0_18] : memref<9x32x256xf32, #tpu.memory_space<vmem>>, vector<1x32x256xf32>
    %32 = vector.shape_cast %31 : vector<1x32x256xf32> to vector<32x256xf32>
    %33 = vector.shape_cast %30 : vector<32x256xf32> to vector<1x32x256xf32>
    tpu.vector_store %arg7[%c1_16, %c0_17, %c0_18], %33 {strides = array<i32>} : memref<9x32x256xf32, #tpu.memory_space<vmem>>, vector<1x32x256xf32>,
    %34 = arith.maximumf %18, %30 : vector<32x256xf32>
    %35 = vector.extract_strided_slice %9 {offsets = [0, 2], sizes = [32, 1], strides = [1, 1]} : vector<32x9xf32> to vector<32x1xf32>
    %c15_i32 = arith.constant 15 : i32
    %36 = tpu.dynamic_rotate %6 by %c15_i32 dim 1 : vector<32x256xf32>, i32 -> vector<32x256xf32>
    %c2 = arith.constant 2 : index
    %c0_19 = arith.constant 0 : index
    %c0_20 = arith.constant 0 : index
    %37 = vector.load %arg5[%c2, %c0_19, %c0_20] : memref<9x1x256xf32, #tpu.memory_space<vmem>>, vector<1x1x256xf32>
    %38 = vector.shape_cast %37 : vector<1x1x256xf32> to vector<1x256xf32>
    %39 = vector.broadcast %38 : vector<1x256xf32> to vector<32x256xf32>
    %40 = arith.mulf %36, %39 : vector<32x256xf32>
    %41 = vector.broadcast %35 : vector<32x1xf32> to vector<32x256xf32>
    %42 = arith.addf %40, %41 : vector<32x256xf32>
    %43 = arith.mulf %5, %42 : vector<32x256xf32>
    %c2_21 = arith.constant 2 : index
    %c0_22 = arith.constant 0 : index
    %c0_23 = arith.constant 0 : index
    %44 = vector.load %arg7[%c2_21, %c0_22, %c0_23] : memref<9x32x256xf32, #tpu.memory_space<vmem>>, vector<1x32x256xf32>
    %45 = vector.shape_cast %44 : vector<1x32x256xf32> to vector<32x256xf32>
    %46 = vector.shape_cast %43 : vector<32x256xf32> to vector<1x32x256xf32>
    tpu.vector_store %arg7[%c2_21, %c0_22, %c0_23], %46 {strides = array<i32>} : memref<9x32x256xf32, #tpu.memory_space<vmem>>, vector<1x32x256xf32>,
    %47 = arith.maximumf %34, %43 : vector<32x256xf32>
    %48 = vector.extract_strided_slice %9 {offsets = [0, 3], sizes = [32, 1], strides = [1, 1]} : vector<32x9xf32> to vector<32x1xf32>
    %c1_i32 = arith.constant 1 : i32
    %49 = tpu.dynamic_rotate %6 by %c1_i32 dim 1 : vector<32x256xf32>, i32 -> vector<32x256xf32>
    %c3 = arith.constant 3 : index
    %c0_24 = arith.constant 0 : index
    %c0_25 = arith.constant 0 : index
    %50 = vector.load %arg5[%c3, %c0_24, %c0_25] : memref<9x1x256xf32, #tpu.memory_space<vmem>>, vector<1x1x256xf32>
    %51 = vector.shape_cast %50 : vector<1x1x256xf32> to vector<1x256xf32>
    %52 = vector.broadcast %51 : vector<1x256xf32> to vector<32x256xf32>
    %53 = arith.mulf %49, %52 : vector<32x256xf32>
    %54 = vector.broadcast %48 : vector<32x1xf32> to vector<32x256xf32>
    %55 = arith.addf %53, %54 : vector<32x256xf32>
    %56 = arith.mulf %5, %55 : vector<32x256xf32>
    %c3_26 = arith.constant 3 : index
    %c0_27 = arith.constant 0 : index
    %c0_28 = arith.constant 0 : index
    %57 = vector.load %arg7[%c3_26, %c0_27, %c0_28] : memref<9x32x256xf32, #tpu.memory_space<vmem>>, vector<1x32x256xf32>
    %58 = vector.shape_cast %57 : vector<1x32x256xf32> to vector<32x256xf32>
    %59 = vector.shape_cast %56 : vector<32x256xf32> to vector<1x32x256xf32>
    tpu.vector_store %arg7[%c3_26, %c0_27, %c0_28], %59 {strides = array<i32>} : memref<9x32x256xf32, #tpu.memory_space<vmem>>, vector<1x32x256xf32>,
    %60 = arith.maximumf %47, %56 : vector<32x256xf32>
    %61 = vector.extract_strided_slice %9 {offsets = [0, 4], sizes = [32, 1], strides = [1, 1]} : vector<32x9xf32> to vector<32x1xf32>
    %62 = vector.broadcast %61 : vector<32x1xf32> to vector<32x256xf32>
    %63 = arith.addf %6, %62 : vector<32x256xf32>
    %64 = arith.mulf %5, %63 : vector<32x256xf32>
    %c4 = arith.constant 4 : index
    %c0_29 = arith.constant 0 : index
    %c0_30 = arith.constant 0 : index
    %65 = vector.load %arg7[%c4, %c0_29, %c0_30] : memref<9x32x256xf32, #tpu.memory_space<vmem>>, vector<1x32x256xf32>
    %66 = vector.shape_cast %65 : vector<1x32x256xf32> to vector<32x256xf32>
    %67 = vector.shape_cast %64 : vector<32x256xf32> to vector<1x32x256xf32>
    tpu.vector_store %arg7[%c4, %c0_29, %c0_30], %67 {strides = array<i32>} : memref<9x32x256xf32, #tpu.memory_space<vmem>>, vector<1x32x256xf32>,
    %68 = arith.maximumf %60, %64 : vector<32x256xf32>
    %69 = vector.extract_strided_slice %9 {offsets = [0, 5], sizes = [32, 1], strides = [1, 1]} : vector<32x9xf32> to vector<32x1xf32>
    %c255_i32 = arith.constant 255 : i32
    %70 = tpu.dynamic_rotate %6 by %c255_i32 dim 1 : vector<32x256xf32>, i32 -> vector<32x256xf32>
    %c5 = arith.constant 5 : index
    %c0_31 = arith.constant 0 : index
    %c0_32 = arith.constant 0 : index
    %71 = vector.load %arg5[%c5, %c0_31, %c0_32] : memref<9x1x256xf32, #tpu.memory_space<vmem>>, vector<1x1x256xf32>
    %72 = vector.shape_cast %71 : vector<1x1x256xf32> to vector<1x256xf32>
    %73 = vector.broadcast %72 : vector<1x256xf32> to vector<32x256xf32>
    %74 = arith.mulf %70, %73 : vector<32x256xf32>
    %75 = vector.broadcast %69 : vector<32x1xf32> to vector<32x256xf32>
    %76 = arith.addf %74, %75 : vector<32x256xf32>
    %77 = arith.mulf %5, %76 : vector<32x256xf32>
    %c5_33 = arith.constant 5 : index
    %c0_34 = arith.constant 0 : index
    %c0_35 = arith.constant 0 : index
    %78 = vector.load %arg7[%c5_33, %c0_34, %c0_35] : memref<9x32x256xf32, #tpu.memory_space<vmem>>, vector<1x32x256xf32>
    %79 = vector.shape_cast %78 : vector<1x32x256xf32> to vector<32x256xf32>
    %80 = vector.shape_cast %77 : vector<32x256xf32> to vector<1x32x256xf32>
    tpu.vector_store %arg7[%c5_33, %c0_34, %c0_35], %80 {strides = array<i32>} : memref<9x32x256xf32, #tpu.memory_space<vmem>>, vector<1x32x256xf32>,
    %81 = arith.maximumf %68, %77 : vector<32x256xf32>
    %82 = vector.extract_strided_slice %9 {offsets = [0, 6], sizes = [32, 1], strides = [1, 1]} : vector<32x9xf32> to vector<32x1xf32>
    %c241_i32 = arith.constant 241 : i32
    %83 = tpu.dynamic_rotate %6 by %c241_i32 dim 1 : vector<32x256xf32>, i32 -> vector<32x256xf32>
    %c6 = arith.constant 6 : index
    %c0_36 = arith.constant 0 : index
    %c0_37 = arith.constant 0 : index
    %84 = vector.load %arg5[%c6, %c0_36, %c0_37] : memref<9x1x256xf32, #tpu.memory_space<vmem>>, vector<1x1x256xf32>
    %85 = vector.shape_cast %84 : vector<1x1x256xf32> to vector<1x256xf32>
    %86 = vector.broadcast %85 : vector<1x256xf32> to vector<32x256xf32>
    %87 = arith.mulf %83, %86 : vector<32x256xf32>
    %88 = vector.broadcast %82 : vector<32x1xf32> to vector<32x256xf32>
    %89 = arith.addf %87, %88 : vector<32x256xf32>
    %90 = arith.mulf %5, %89 : vector<32x256xf32>
    %c6_38 = arith.constant 6 : index
    %c0_39 = arith.constant 0 : index
    %c0_40 = arith.constant 0 : index
    %91 = vector.load %arg7[%c6_38, %c0_39, %c0_40] : memref<9x32x256xf32, #tpu.memory_space<vmem>>, vector<1x32x256xf32>
    %92 = vector.shape_cast %91 : vector<1x32x256xf32> to vector<32x256xf32>
    %93 = vector.shape_cast %90 : vector<32x256xf32> to vector<1x32x256xf32>
    tpu.vector_store %arg7[%c6_38, %c0_39, %c0_40], %93 {strides = array<i32>} : memref<9x32x256xf32, #tpu.memory_space<vmem>>, vector<1x32x256xf32>,
    %94 = arith.maximumf %81, %90 : vector<32x256xf32>
    %95 = vector.extract_strided_slice %9 {offsets = [0, 7], sizes = [32, 1], strides = [1, 1]} : vector<32x9xf32> to vector<32x1xf32>
    %c240_i32 = arith.constant 240 : i32
    %96 = tpu.dynamic_rotate %6 by %c240_i32 dim 1 : vector<32x256xf32>, i32 -> vector<32x256xf32>
    %c7 = arith.constant 7 : index
    %c0_41 = arith.constant 0 : index
    %c0_42 = arith.constant 0 : index
    %97 = vector.load %arg5[%c7, %c0_41, %c0_42] : memref<9x1x256xf32, #tpu.memory_space<vmem>>, vector<1x1x256xf32>
    %98 = vector.shape_cast %97 : vector<1x1x256xf32> to vector<1x256xf32>
    %99 = vector.broadcast %98 : vector<1x256xf32> to vector<32x256xf32>
    %100 = arith.mulf %96, %99 : vector<32x256xf32>
    %101 = vector.broadcast %95 : vector<32x1xf32> to vector<32x256xf32>
    %102 = arith.addf %100, %101 : vector<32x256xf32>
    %103 = arith.mulf %5, %102 : vector<32x256xf32>
    %c7_43 = arith.constant 7 : index
    %c0_44 = arith.constant 0 : index
    %c0_45 = arith.constant 0 : index
    %104 = vector.load %arg7[%c7_43, %c0_44, %c0_45] : memref<9x32x256xf32, #tpu.memory_space<vmem>>, vector<1x32x256xf32>
    %105 = vector.shape_cast %104 : vector<1x32x256xf32> to vector<32x256xf32>
    %106 = vector.shape_cast %103 : vector<32x256xf32> to vector<1x32x256xf32>
    tpu.vector_store %arg7[%c7_43, %c0_44, %c0_45], %106 {strides = array<i32>} : memref<9x32x256xf32, #tpu.memory_space<vmem>>, vector<1x32x256xf32>,
    %107 = arith.maximumf %94, %103 : vector<32x256xf32>
    %108 = vector.extract_strided_slice %9 {offsets = [0, 8], sizes = [32, 1], strides = [1, 1]} : vector<32x9xf32> to vector<32x1xf32>
    %c239_i32 = arith.constant 239 : i32
    %109 = tpu.dynamic_rotate %6 by %c239_i32 dim 1 : vector<32x256xf32>, i32 -> vector<32x256xf32>
    %c8 = arith.constant 8 : index
    %c0_46 = arith.constant 0 : index
    %c0_47 = arith.constant 0 : index
    %110 = vector.load %arg5[%c8, %c0_46, %c0_47] : memref<9x1x256xf32, #tpu.memory_space<vmem>>, vector<1x1x256xf32>
    %111 = vector.shape_cast %110 : vector<1x1x256xf32> to vector<1x256xf32>
    %112 = vector.broadcast %111 : vector<1x256xf32> to vector<32x256xf32>
    %113 = arith.mulf %109, %112 : vector<32x256xf32>
    %114 = vector.broadcast %108 : vector<32x1xf32> to vector<32x256xf32>
    %115 = arith.addf %113, %114 : vector<32x256xf32>
    %116 = arith.mulf %5, %115 : vector<32x256xf32>
    %c8_48 = arith.constant 8 : index
    %c0_49 = arith.constant 0 : index
    %c0_50 = arith.constant 0 : index
    %117 = vector.load %arg7[%c8_48, %c0_49, %c0_50] : memref<9x32x256xf32, #tpu.memory_space<vmem>>, vector<1x32x256xf32>
    %118 = vector.shape_cast %117 : vector<1x32x256xf32> to vector<32x256xf32>
    %119 = vector.shape_cast %116 : vector<32x256xf32> to vector<1x32x256xf32>
    tpu.vector_store %arg7[%c8_48, %c0_49, %c0_50], %119 {strides = array<i32>} : memref<9x32x256xf32, #tpu.memory_space<vmem>>, vector<1x32x256xf32>,
    %120 = arith.maximumf %107, %116 : vector<32x256xf32>
    %c0_51 = arith.constant 0 : index
    %c0_52 = arith.constant 0 : index
    %c0_53 = arith.constant 0 : index
    %121 = vector.load %arg7[%c0_51, %c0_52, %c0_53] : memref<9x32x256xf32, #tpu.memory_space<vmem>>, vector<1x32x256xf32>
    %122 = vector.shape_cast %121 : vector<1x32x256xf32> to vector<32x256xf32>
    %123 = arith.subf %122, %120 : vector<32x256xf32>
    %124 = math.exp %123 : vector<32x256xf32>
    %c17_i32_54 = arith.constant 17 : i32
    %125 = tpu.dynamic_rotate %7 by %c17_i32_54 dim 1 : vector<32x256xf32>, i32 -> vector<32x256xf32>
    %c0_55 = arith.constant 0 : index
    %c0_56 = arith.constant 0 : index
    %c0_57 = arith.constant 0 : index
    %126 = vector.load %arg5[%c0_55, %c0_56, %c0_57] : memref<9x1x256xf32, #tpu.memory_space<vmem>>, vector<1x1x256xf32>
    %127 = vector.shape_cast %126 : vector<1x1x256xf32> to vector<1x256xf32>
    %128 = vector.broadcast %127 : vector<1x256xf32> to vector<32x256xf32>
    %129 = arith.mulf %124, %128 : vector<32x256xf32>
    %130 = arith.mulf %129, %125 : vector<32x256xf32>
    %c1_58 = arith.constant 1 : index
    %c0_59 = arith.constant 0 : index
    %c0_60 = arith.constant 0 : index
    %131 = vector.load %arg7[%c1_58, %c0_59, %c0_60] : memref<9x32x256xf32, #tpu.memory_space<vmem>>, vector<1x32x256xf32>
    %132 = vector.shape_cast %131 : vector<1x32x256xf32> to vector<32x256xf32>
    %133 = arith.subf %132, %120 : vector<32x256xf32>
    %134 = math.exp %133 : vector<32x256xf32>
    %c16_i32_61 = arith.constant 16 : i32
    %135 = tpu.dynamic_rotate %7 by %c16_i32_61 dim 1 : vector<32x256xf32>, i32 -> vector<32x256xf32>
    %c1_62 = arith.constant 1 : index
    %c0_63 = arith.constant 0 : index
    %c0_64 = arith.constant 0 : index
    %136 = vector.load %arg5[%c1_62, %c0_63, %c0_64] : memref<9x1x256xf32, #tpu.memory_space<vmem>>, vector<1x1x256xf32>
    %137 = vector.shape_cast %136 : vector<1x1x256xf32> to vector<1x256xf32>
    %138 = vector.broadcast %137 : vector<1x256xf32> to vector<32x256xf32>
    %139 = arith.mulf %134, %138 : vector<32x256xf32>
    %140 = arith.mulf %139, %135 : vector<32x256xf32>
    %141 = arith.addf %124, %134 : vector<32x256xf32>
    %142 = arith.addf %130, %140 : vector<32x256xf32>
    %c2_65 = arith.constant 2 : index
    %c0_66 = arith.constant 0 : index
    %c0_67 = arith.constant 0 : index
    %143 = vector.load %arg7[%c2_65, %c0_66, %c0_67] : memref<9x32x256xf32, #tpu.memory_space<vmem>>, vector<1x32x256xf32>
    %144 = vector.shape_cast %143 : vector<1x32x256xf32> to vector<32x256xf32>
    %145 = arith.subf %144, %120 : vector<32x256xf32>
    %146 = math.exp %145 : vector<32x256xf32>
    %c15_i32_68 = arith.constant 15 : i32
    %147 = tpu.dynamic_rotate %7 by %c15_i32_68 dim 1 : vector<32x256xf32>, i32 -> vector<32x256xf32>
    %c2_69 = arith.constant 2 : index
    %c0_70 = arith.constant 0 : index
    %c0_71 = arith.constant 0 : index
    %148 = vector.load %arg5[%c2_69, %c0_70, %c0_71] : memref<9x1x256xf32, #tpu.memory_space<vmem>>, vector<1x1x256xf32>
    %149 = vector.shape_cast %148 : vector<1x1x256xf32> to vector<1x256xf32>
    %150 = vector.broadcast %149 : vector<1x256xf32> to vector<32x256xf32>
    %151 = arith.mulf %146, %150 : vector<32x256xf32>
    %152 = arith.mulf %151, %147 : vector<32x256xf32>
    %153 = arith.addf %141, %146 : vector<32x256xf32>
    %154 = arith.addf %142, %152 : vector<32x256xf32>
    %c3_72 = arith.constant 3 : index
    %c0_73 = arith.constant 0 : index
    %c0_74 = arith.constant 0 : index
    %155 = vector.load %arg7[%c3_72, %c0_73, %c0_74] : memref<9x32x256xf32, #tpu.memory_space<vmem>>, vector<1x32x256xf32>
    %156 = vector.shape_cast %155 : vector<1x32x256xf32> to vector<32x256xf32>
    %157 = arith.subf %156, %120 : vector<32x256xf32>
    %158 = math.exp %157 : vector<32x256xf32>
    %c1_i32_75 = arith.constant 1 : i32
    %159 = tpu.dynamic_rotate %7 by %c1_i32_75 dim 1 : vector<32x256xf32>, i32 -> vector<32x256xf32>
    %c3_76 = arith.constant 3 : index
    %c0_77 = arith.constant 0 : index
    %c0_78 = arith.constant 0 : index
    %160 = vector.load %arg5[%c3_76, %c0_77, %c0_78] : memref<9x1x256xf32, #tpu.memory_space<vmem>>, vector<1x1x256xf32>
    %161 = vector.shape_cast %160 : vector<1x1x256xf32> to vector<1x256xf32>
    %162 = vector.broadcast %161 : vector<1x256xf32> to vector<32x256xf32>
    %163 = arith.mulf %158, %162 : vector<32x256xf32>
    %164 = arith.mulf %163, %159 : vector<32x256xf32>
    %165 = arith.addf %153, %158 : vector<32x256xf32>
    %166 = arith.addf %154, %164 : vector<32x256xf32>
    %c4_79 = arith.constant 4 : index
    %c0_80 = arith.constant 0 : index
    %c0_81 = arith.constant 0 : index
    %167 = vector.load %arg7[%c4_79, %c0_80, %c0_81] : memref<9x32x256xf32, #tpu.memory_space<vmem>>, vector<1x32x256xf32>
    %168 = vector.shape_cast %167 : vector<1x32x256xf32> to vector<32x256xf32>
    %169 = arith.subf %168, %120 : vector<32x256xf32>
    %170 = math.exp %169 : vector<32x256xf32>
    %171 = arith.mulf %170, %7 : vector<32x256xf32>
    %172 = arith.addf %165, %170 : vector<32x256xf32>
    %173 = arith.addf %166, %171 : vector<32x256xf32>
    %c5_82 = arith.constant 5 : index
    %c0_83 = arith.constant 0 : index
    %c0_84 = arith.constant 0 : index
    %174 = vector.load %arg7[%c5_82, %c0_83, %c0_84] : memref<9x32x256xf32, #tpu.memory_space<vmem>>, vector<1x32x256xf32>
    %175 = vector.shape_cast %174 : vector<1x32x256xf32> to vector<32x256xf32>
    %176 = arith.subf %175, %120 : vector<32x256xf32>
    %177 = math.exp %176 : vector<32x256xf32>
    %c255_i32_85 = arith.constant 255 : i32
    %178 = tpu.dynamic_rotate %7 by %c255_i32_85 dim 1 : vector<32x256xf32>, i32 -> vector<32x256xf32>
    %c5_86 = arith.constant 5 : index
    %c0_87 = arith.constant 0 : index
    %c0_88 = arith.constant 0 : index
    %179 = vector.load %arg5[%c5_86, %c0_87, %c0_88] : memref<9x1x256xf32, #tpu.memory_space<vmem>>, vector<1x1x256xf32>
    %180 = vector.shape_cast %179 : vector<1x1x256xf32> to vector<1x256xf32>
    %181 = vector.broadcast %180 : vector<1x256xf32> to vector<32x256xf32>
    %182 = arith.mulf %177, %181 : vector<32x256xf32>
    %183 = arith.mulf %182, %178 : vector<32x256xf32>
    %184 = arith.addf %172, %177 : vector<32x256xf32>
    %185 = arith.addf %173, %183 : vector<32x256xf32>
    %c6_89 = arith.constant 6 : index
    %c0_90 = arith.constant 0 : index
    %c0_91 = arith.constant 0 : index
    %186 = vector.load %arg7[%c6_89, %c0_90, %c0_91] : memref<9x32x256xf32, #tpu.memory_space<vmem>>, vector<1x32x256xf32>
    %187 = vector.shape_cast %186 : vector<1x32x256xf32> to vector<32x256xf32>
    %188 = arith.subf %187, %120 : vector<32x256xf32>
    %189 = math.exp %188 : vector<32x256xf32>
    %c241_i32_92 = arith.constant 241 : i32
    %190 = tpu.dynamic_rotate %7 by %c241_i32_92 dim 1 : vector<32x256xf32>, i32 -> vector<32x256xf32>
    %c6_93 = arith.constant 6 : index
    %c0_94 = arith.constant 0 : index
    %c0_95 = arith.constant 0 : index
    %191 = vector.load %arg5[%c6_93, %c0_94, %c0_95] : memref<9x1x256xf32, #tpu.memory_space<vmem>>, vector<1x1x256xf32>
    %192 = vector.shape_cast %191 : vector<1x1x256xf32> to vector<1x256xf32>
    %193 = vector.broadcast %192 : vector<1x256xf32> to vector<32x256xf32>
    %194 = arith.mulf %189, %193 : vector<32x256xf32>
    %195 = arith.mulf %194, %190 : vector<32x256xf32>
    %196 = arith.addf %184, %189 : vector<32x256xf32>
    %197 = arith.addf %185, %195 : vector<32x256xf32>
    %c7_96 = arith.constant 7 : index
    %c0_97 = arith.constant 0 : index
    %c0_98 = arith.constant 0 : index
    %198 = vector.load %arg7[%c7_96, %c0_97, %c0_98] : memref<9x32x256xf32, #tpu.memory_space<vmem>>, vector<1x32x256xf32>
    %199 = vector.shape_cast %198 : vector<1x32x256xf32> to vector<32x256xf32>
    %200 = arith.subf %199, %120 : vector<32x256xf32>
    %201 = math.exp %200 : vector<32x256xf32>
    %c240_i32_99 = arith.constant 240 : i32
    %202 = tpu.dynamic_rotate %7 by %c240_i32_99 dim 1 : vector<32x256xf32>, i32 -> vector<32x256xf32>
    %c7_100 = arith.constant 7 : index
    %c0_101 = arith.constant 0 : index
    %c0_102 = arith.constant 0 : index
    %203 = vector.load %arg5[%c7_100, %c0_101, %c0_102] : memref<9x1x256xf32, #tpu.memory_space<vmem>>, vector<1x1x256xf32>
    %204 = vector.shape_cast %203 : vector<1x1x256xf32> to vector<1x256xf32>
    %205 = vector.broadcast %204 : vector<1x256xf32> to vector<32x256xf32>
    %206 = arith.mulf %201, %205 : vector<32x256xf32>
    %207 = arith.mulf %206, %202 : vector<32x256xf32>
    %208 = arith.addf %196, %201 : vector<32x256xf32>
    %209 = arith.addf %197, %207 : vector<32x256xf32>
    %c8_103 = arith.constant 8 : index
    %c0_104 = arith.constant 0 : index
    %c0_105 = arith.constant 0 : index
    %210 = vector.load %arg7[%c8_103, %c0_104, %c0_105] : memref<9x32x256xf32, #tpu.memory_space<vmem>>, vector<1x32x256xf32>
    %211 = vector.shape_cast %210 : vector<1x32x256xf32> to vector<32x256xf32>
    %212 = arith.subf %211, %120 : vector<32x256xf32>
    %213 = math.exp %212 : vector<32x256xf32>
    %c239_i32_106 = arith.constant 239 : i32
    %214 = tpu.dynamic_rotate %7 by %c239_i32_106 dim 1 : vector<32x256xf32>, i32 -> vector<32x256xf32>
    %c8_107 = arith.constant 8 : index
    %c0_108 = arith.constant 0 : index
    %c0_109 = arith.constant 0 : index
    %215 = vector.load %arg5[%c8_107, %c0_108, %c0_109] : memref<9x1x256xf32, #tpu.memory_space<vmem>>, vector<1x1x256xf32>
    %216 = vector.shape_cast %215 : vector<1x1x256xf32> to vector<1x256xf32>
    %217 = vector.broadcast %216 : vector<1x256xf32> to vector<32x256xf32>
    %218 = arith.mulf %213, %217 : vector<32x256xf32>
    %219 = arith.mulf %218, %214 : vector<32x256xf32>
    %220 = arith.addf %208, %213 : vector<32x256xf32>
    %221 = arith.addf %209, %219 : vector<32x256xf32>
    %222 = tpu.reciprocal %220 {approx = true} : vector<32x256xf32> -> vector<32x256xf32>
    %223 = arith.mulf %220, %222 : vector<32x256xf32>
    %cst_110 = arith.constant 2.000000e+00 : f32
    %224 = vector.broadcast %cst_110 : f32 to vector<32x256xf32>
    %225 = arith.subf %224, %223 : vector<32x256xf32>
    %226 = arith.mulf %222, %225 : vector<32x256xf32>
    %227 = arith.mulf %221, %226 : vector<32x256xf32>
    %c0_111 = arith.constant 0 : index
    %c0_112 = arith.constant 0 : index
    %c0_113 = arith.constant 0 : index
    %228 = vector.load %arg6[%c0_111, %c0_112, %c0_113] : memref<1x32x256xf32, #tpu.memory_space<vmem>>, vector<1x32x256xf32>
    %229 = vector.shape_cast %228 : vector<1x32x256xf32> to vector<32x256xf32>
    %230 = vector.shape_cast %227 : vector<32x256xf32> to vector<1x32x256xf32>
    tpu.vector_store %arg6[%c0_111, %c0_112, %c0_113], %230 {strides = array<i32>} : memref<1x32x256xf32, #tpu.memory_space<vmem>>, vector<1x32x256xf32>,
    return
  }
  func.func @transform_0(%arg0: i32, %arg1: i32) -> (i32, i32, i32) {
    %c0_i32 = arith.constant 0 : i32
    %c0_i32_0 = arith.constant 0 : i32
    %c0_i32_1 = arith.constant 0 : i32
    return %arg0, %c0_i32, %c0_i32_0 : i32, i32, i32
  }
  func.func @transform_1(%arg0: i32, %arg1: i32) -> (i32, i32, i32) {
    %c0_i32 = arith.constant 0 : i32
    %c0_i32_0 = arith.constant 0 : i32
    %c0_i32_1 = arith.constant 0 : i32
    return %arg1, %c0_i32, %c0_i32_0 : i32, i32, i32
  }
  func.func @transform_2(%arg0: i32, %arg1: i32) -> (i32, i32, i32) {
    %c0_i32 = arith.constant 0 : i32
    %c0_i32_0 = arith.constant 0 : i32
    %c0_i32_1 = arith.constant 0 : i32
    return %arg1, %c0_i32, %c0_i32_0 : i32, i32, i32
  }
  func.func @transform_3(%arg0: i32, %arg1: i32) -> (i32, i32, i32) {
    %c0_i32 = arith.constant 0 : i32
    %c0_i32_0 = arith.constant 0 : i32
    %c0_i32_1 = arith.constant 0 : i32
    %c0_i32_2 = arith.constant 0 : i32
    return %c0_i32, %c0_i32_0, %c0_i32_1 : i32, i32, i32
  }
  func.func @transform_4(%arg0: i32, %arg1: i32) -> (i32, i32, i32) {
    %c0_i32 = arith.constant 0 : i32
    %c0_i32_0 = arith.constant 0 : i32
    return %arg0, %arg1, %c0_i32 : i32, i32, i32
  }
}

</mosaic_0001>

<llo_original>
// kernel: tpu_custom_call.1
$region0: #{tpu_custom_call.1}
  #allocation0 [shape = 'u32[]', space=smem, size = 0x4, offset = 0x4, fixed_abs, tag = 'smem constant byte address 0x4 - core index']
  #allocation1 [shape = 'u32[144,128]{1,0:T(1,128)}', space=vmem, size = 0x12000, scoped, tag = 'internal scratch']
  #allocation2 [shape = 'f32[9,32,256]{2,1,0:T(8,128)}', space=vmem, size = 0x48000, scoped, tag = 'scratch operand']
  %s0 = inlined_call_operand.vmem [shape: f32[2,8,256], index: 0, kind: input, shape index: {}]
  %s1 = inlined_call_operand.vmem [shape: f32[1,96,8], index: 1, kind: input, shape index: {}]
  %s2 = inlined_call_operand.vmem [shape: f32[1,32,9], index: 2, kind: input, shape index: {}]
  %s3 = inlined_call_operand.vmem [shape: f32[9,1,256], index: 3, kind: input, shape index: {}]
  %s4 = inlined_call_operand.hbm [shape: f32[2,32,256], index: 4, kind: output, shape index: {}]
  %s5 = sld [smem:[#allocation0]]
  $region49: #{tpu_custom_call.1} parent=0
    _
  %s7 = ssub.s32 1, %s5
  %s8 = scalar_select 0, %s7, %s5
  $region1: #{tpu_custom_call.1} parent=0
    #allocation3 [shape = 'u8[65536]{0}', space=vmem, size = 0x10000, scoped, tag = 'output window, operand 0']
    #allocation4 [shape = 's32[2]{0}', space=sflag, size = 0x8, scoped, tag = 'scoped memory for tpu_custom_call.1']
    %9 = vsyncpa [#allocation4], 0
    %s10 = scalar_lea.sflag [#allocation4], 1
    %11 = vsyncpa %s10, 0
    loop: start=0, step=1, limit=4
    $region2: #{tpu_custom_call.1} parent=1 // loop_pre_header
      _
    $region3: #{tpu_custom_call.1} parent=1 // loop_header
      %s13 = sphi 0, %s17
      %p14 = scmp.ge.s32.totalorder %s13, 4
      %s20 = sphi 0, %s32
      %s21 = sphi 0, %s28
      %s22 = sphi 0, %s20
      %s23 = sphi 0, %s21
      %s24 = sphi 0, %s22
      %s25 = sphi 0, %s23
      %s35 = sphi 0, %s37
      %s38 = sphi 0, %s35
      %s39 = sphi 0, %s38
      %s55 = sphi 0, %s39
      %s61 = sphi 0, %s63
      %s64 = sphi 0, %s61
      %s65 = sphi 0, %s64
      %s81 = sphi 0, %s65
      %s87 = sphi 0, %s89
      %s90 = sphi 0, %s87
      %s91 = sphi 0, %s90
      %s107 = sphi 0, %s91
      %s111 = sphi 0, %s111
      %s113 = sphi 0, %s111
      %s114 = sphi 0, %s113
      %s128 = sphi 0, %s114
      %s136 = sphi 0, %s138
      %s139 = sphi 0, %s136
      %s140 = sphi 0, %s139
      %s156 = sphi 0, %s140
    $region4: #{tpu_custom_call.1} parent=1 // loop_header_branch
      %16 = sbr.rel (%p14) target = $region8
    $region5: #{tpu_custom_call.1} parent=1 // loop_body
      %s18 = ssub.s32 %s13, 1
      %s19 = ssub.s32 %s13, 2
      %s26 = sadd.s32 1, %s21
      %p27 = scmp.ge.s32.totalorder %s26, 1
      %s28 = scalar_select %p27, 0, %s26
      %s29 = sadd.s32 1, %s20
      %s30 = scalar_select %p27, %s29, %s20
      %p31 = scmp.ge.s32.totalorder %s30, 2
      %s32 = scalar_select %p31, 0, %s30
      %s33 = ssub.s32 %s20, %s32
      %p34 = scmp.eq.s32.totalorder %s33, 0
      %s36 = sadd.s32 %s35, 1
      %s37 = scalar_select %p34, %s35, %s36
      %p40 = pneg %p34
      %p41 = scmp.eq.s32.totalorder %s13, 1
      %p42 = por %p40, %p41
      %p43 = scmp.ne.s32.totalorder %s35, %s38
      %p44 = scmp.eq.s32.totalorder %s13, 0
      %p45 = por %p43, %p44
      %p46 = scmp.ne.s32.totalorder %s35, %s38
      %p47 = scmp.eq.s32.totalorder %s18, 1
      %p48 = por %p46, %p47
      %p49 = scmp.ne.s32.totalorder %s38, %s39
      %p50 = scmp.eq.s32.totalorder %s18, 0
      %p51 = por %p49, %p50
      %p52 = scmp.ne.s32.totalorder %s38, %s39
      %p53 = scmp.eq.s32.totalorder %s19, 1
      %p54 = por %p52, %p53
      %p56 = scmp.ne.s32.totalorder %s39, %s55
      %p57 = scmp.eq.s32.totalorder %s19, 0
      %p58 = por %p56, %p57
      %s59 = ssub.s32 %s21, %s28
      %p60 = scmp.eq.s32.totalorder %s59, 0
      %s62 = sadd.s32 %s61, 1
      %s63 = scalar_select %p60, %s61, %s62
      %p66 = pneg %p60
      %p67 = scmp.eq.s32.totalorder %s13, 1
      %p68 = por %p66, %p67
      %p69 = scmp.ne.s32.totalorder %s61, %s64
      %p70 = scmp.eq.s32.totalorder %s13, 0
      %p71 = por %p69, %p70
      %p72 = scmp.ne.s32.totalorder %s61, %s64
      %p73 = scmp.eq.s32.totalorder %s18, 1
      %p74 = por %p72, %p73
      %p75 = scmp.ne.s32.totalorder %s64, %s65
      %p76 = scmp.eq.s32.totalorder %s18, 0
      %p77 = por %p75, %p76
      %p78 = scmp.ne.s32.totalorder %s64, %s65
      %p79 = scmp.eq.s32.totalorder %s19, 1
      %p80 = por %p78, %p79
      %p82 = scmp.ne.s32.totalorder %s65, %s81
      %p83 = scmp.eq.s32.totalorder %s19, 0
      %p84 = por %p82, %p83
      %s85 = ssub.s32 %s21, %s28
      %p86 = scmp.eq.s32.totalorder %s85, 0
      %s88 = sadd.s32 %s87, 1
      %s89 = scalar_select %p86, %s87, %s88
      %p92 = pneg %p86
      %p93 = scmp.eq.s32.totalorder %s13, 1
      %p94 = por %p92, %p93
      %p95 = scmp.ne.s32.totalorder %s87, %s90
      %p96 = scmp.eq.s32.totalorder %s13, 0
      %p97 = por %p95, %p96
      %p98 = scmp.ne.s32.totalorder %s87, %s90
      %p99 = scmp.eq.s32.totalorder %s18, 1
      %p100 = por %p98, %p99
      %p101 = scmp.ne.s32.totalorder %s90, %s91
      %p102 = scmp.eq.s32.totalorder %s18, 0
      %p103 = por %p101, %p102
      %p104 = scmp.ne.s32.totalorder %s90, %s91
      %p105 = scmp.eq.s32.totalorder %s19, 1
      %p106 = por %p104, %p105
      %p108 = scmp.ne.s32.totalorder %s91, %s107
      %p109 = scmp.eq.s32.totalorder %s19, 0
      %p110 = por %p108, %p109
      %s112 = sadd.s32 %s111, 1
      %p115 = scmp.eq.s32.totalorder %s13, 1
      %p116 = scmp.ne.s32.totalorder %s111, %s113
      %p117 = scmp.eq.s32.totalorder %s13, 0
      %p118 = por %p116, %p117
      %p119 = scmp.ne.s32.totalorder %s111, %s113
      %p120 = scmp.eq.s32.totalorder %s18, 1
      %p121 = por %p119, %p120
      %p122 = scmp.ne.s32.totalorder %s113, %s114
      %p123 = scmp.eq.s32.totalorder %s18, 0
      %p124 = por %p122, %p123
      %p125 = scmp.ne.s32.totalorder %s113, %s114
      %p126 = scmp.eq.s32.totalorder %s19, 1
      %p127 = por %p125, %p126
      %p129 = scmp.ne.s32.totalorder %s114, %s128
      %p130 = scmp.eq.s32.totalorder %s19, 0
      %p131 = por %p129, %p130
      %s132 = ssub.s32 %s20, %s32
      %s133 = ssub.s32 %s21, %s28
      %s134 = sor.u32 %s132, %s133
      %p135 = scmp.eq.s32.totalorder %s134, 0
      %s137 = sadd.s32 %s136, 1
      %s138 = scalar_select %p135, %s136, %s137
      %p141 = pneg %p135
      %p142 = scmp.eq.s32.totalorder %s13, 1
      %p143 = por %p141, %p142
      %p144 = scmp.ne.s32.totalorder %s136, %s139
      %p145 = scmp.eq.s32.totalorder %s13, 0
      %p146 = por %p144, %p145
      %p147 = scmp.ne.s32.totalorder %s136, %s139
      %p148 = scmp.eq.s32.totalorder %s18, 1
      %p149 = por %p147, %p148
      %p150 = scmp.ne.s32.totalorder %s139, %s140
      %p151 = scmp.eq.s32.totalorder %s18, 0
      %p152 = por %p150, %p151
      %p153 = scmp.ne.s32.totalorder %s139, %s140
      %p154 = scmp.eq.s32.totalorder %s19, 1
      %p155 = por %p153, %p154
      %p157 = scmp.ne.s32.totalorder %s140, %s156
      %p158 = scmp.eq.s32.totalorder %s19, 0
      %p159 = por %p157, %p158
      %p160 = scmp.le.s32.totalorder 1, %s13
      %p161 = scmp.lt.s32.totalorder %s13, 3
      %p162 = pnand %p160, %p161
      %p163 = pneg %p162
      // Predicated region
      $region9: #{tpu_custom_call.1} parent=5 // pred_check
        _
      $region10: #{tpu_custom_call.1} parent=5 // pred_check_branch
        %165 = sbr.rel (%p162) target = $region12
      $region11: #{tpu_custom_call.1} parent=5 // pred_region
        %s166 = ssub.s32 %s13, 1
        // Predicated region
        $region13: #{tpu_custom_call.1} parent=11 // pred_check
          %p167 = pneg %p77
        $region14: #{tpu_custom_call.1} parent=11 // pred_check_branch
          %169 = sbr.rel (%p167) target = $region16
        $region15: #{tpu_custom_call.1} parent=11 // pred_region
          %p170 = scmp.lt.s32.totalorder %s23, 0
          %s171 = scalar_select %p170, %s23, 0
          %s172 = smul.addr %s171, 12
          %s173 = smul.addr %s172, 8
          %s174 = scalar_lea.vmem %s1, %s173
        $region16: #{tpu_custom_call.1} parent=11 // pred_fallthru
          _
        // Predicated region
        $region17: #{tpu_custom_call.1} parent=11 // pred_check
          %p175 = pneg %p103
        $region18: #{tpu_custom_call.1} parent=11 // pred_check_branch
          %177 = sbr.rel (%p175) target = $region20
        $region19: #{tpu_custom_call.1} parent=11 // pred_region
          %p178 = scmp.lt.s32.totalorder %s23, 0
          %s179 = scalar_select %p178, %s23, 0
          %s180 = smul.addr %s179, 4
          %s181 = smul.addr %s180, 8
          %s182 = scalar_lea.vmem %s2, %s181
        $region20: #{tpu_custom_call.1} parent=11 // pred_fallthru
          _
        // Predicated region
        $region21: #{tpu_custom_call.1} parent=11 // pred_check
          %p183 = pneg %p124
        $region22: #{tpu_custom_call.1} parent=11 // pred_check_branch
          %185 = sbr.rel (%p183) target = $region24
        $region23: #{tpu_custom_call.1} parent=11 // pred_region
          _
        $region24: #{tpu_custom_call.1} parent=11 // pred_fallthru
          _
      $region12: #{tpu_custom_call.1} parent=5 // pred_fallthru
        _
      %p186 = scmp.lt.s32.totalorder %s13, 2
      // Predicated region
      $region25: #{tpu_custom_call.1} parent=5 // pred_check
        %p187 = pneg %p186
      $region26: #{tpu_custom_call.1} parent=5 // pred_check_branch
        %189 = sbr.rel (%p187) target = $region28
      $region27: #{tpu_custom_call.1} parent=5 // pred_region
        // Predicated region
        $region29: #{tpu_custom_call.1} parent=27 // pred_check
          %p190 = pneg %p45
        $region30: #{tpu_custom_call.1} parent=27 // pred_check_branch
          %192 = sbr.rel (%p190) target = $region32
        $region31: #{tpu_custom_call.1} parent=27 // pred_region
          %p193 = scmp.lt.s32.totalorder %s20, 1
          %s194 = scalar_select %p193, %s20, 1
          %s195 = smul.addr %s194, 2
          %s196 = smul.addr %s195, 8
          %s197 = scalar_lea.vmem %s0, %s196
        $region32: #{tpu_custom_call.1} parent=27 // pred_fallthru
          _
      $region28: #{tpu_custom_call.1} parent=5 // pred_fallthru
        _
      %p198 = scmp.le.s32.totalorder 1, %s13
      %p199 = scmp.lt.s32.totalorder %s13, 3
      %p200 = pnand %p198, %p199
      %p201 = pneg %p200
      // Predicated region
      $region33: #{tpu_custom_call.1} parent=5 // pred_check
        _
      $region34: #{tpu_custom_call.1} parent=5 // pred_check_branch
        %203 = sbr.rel (%p200) target = $region36
      $region35: #{tpu_custom_call.1} parent=5 // pred_region
        %s204 = ssub.s32 %s13, 1
        %p205 = scmp.lt.s32.totalorder %s22, 1
        %s206 = scalar_select %p205, %s22, 1
        %s207 = smul.addr %s206, 2
        %s208 = smul.addr %s207, 8
        %s209 = scalar_lea.vmem %s0, %s208
        %p210 = pneg %p51
        %p211 = pneg %p48
        %p212 = scmp.lt.s32.totalorder %s23, 0
        %s213 = scalar_select %p212, %s23, 0
        %s214 = smul.addr %s213, 12
        %s215 = smul.addr %s214, 8
        %s216 = scalar_lea.vmem %s1, %s215
        %p217 = pneg %p77
        %p218 = pneg %p74
        %p219 = scmp.lt.s32.totalorder %s23, 0
        %s220 = scalar_select %p219, %s23, 0
        %s221 = smul.addr %s220, 4
        %s222 = smul.addr %s221, 8
        %s223 = scalar_lea.vmem %s2, %s222
        %p224 = pneg %p103
        %p225 = pneg %p100
        %p226 = pneg %p124
        %p227 = pneg %p121
        %p228 = pneg %p152
        %p229 = pneg %p149
        %s230 = sand.u32 %s139, 1
        %s231 = scalar_lea.sflag [#allocation4], %s230
        %s232 = sand.u32 %s139, 1
        %s233 = smul.addr %s232, 64
        %s234 = scalar_lea.vmem [#allocation3], %s233
        %p235 = scmp.lt.s32.totalorder %s22, 1
        %s236 = scalar_select %p235, %s22, 1
        %s237 = smul.addr %s236, 2
        %s238 = smul.addr %s237, 8
        %s239 = scalar_lea.vmem %s0, %s238
        %p240 = scmp.lt.s32.totalorder %s23, 0
        %s241 = scalar_select %p240, %s23, 0
        %s242 = smul.addr %s241, 12
        %s243 = smul.addr %s242, 8
        %s244 = scalar_lea.vmem %s1, %s243
        %p245 = scmp.lt.s32.totalorder %s23, 0
        %s246 = scalar_select %p245, %s23, 0
        %s247 = smul.addr %s246, 4
        %s248 = smul.addr %s247, 8
        %s249 = scalar_lea.vmem %s2, %s248
        %s250 = smul.u32 4, %s23
        %v251 = vld [vmem:[%s244] sm:$0xff]
        %v252 = vld [vmem:[%s244 + $0x8] sm:$0xff]
        %v253 = vld [vmem:[%s244 + $0x10] sm:$0xff]
        %v254 = vld [vmem:[%s244 + $0x18] sm:$0xff]
        %v255 = vld [vmem:[%s244 + $0x20] sm:$0xff]
        %v256 = vld [vmem:[%s244 + $0x28] sm:$0xff]
        %v257 = vld [vmem:[%s244 + $0x30] sm:$0xff]
        %v258 = vld [vmem:[%s244 + $0x38] sm:$0xff]
        %v259 = vld [vmem:[%s244 + $0x40] sm:$0xff]
        %v260 = vld [vmem:[%s244 + $0x48] sm:$0xff]
        %v261 = vld [vmem:[%s244 + $0x50] sm:$0xff]
        %v262 = vld [vmem:[%s244 + $0x58] sm:$0xff]
        %v263 = vld [vmem:[%s239] sm:$0xff]
        %v264 = vld [vmem:[%s239 + $0x8] sm:$0xff]
        %vm265 = vcmask 64512
        %v267 = vsel %vm265, %v251, 0
        %v270 = vsel %vm265, %v252, 0
        %v273 = vsel %vm265, %v253, 0
        %v276 = vsel %vm265, %v254, 0
        %v279 = vsel %vm265, %v255, 0
        %v282 = vsel %vm265, %v256, 0
        %v285 = vsel %vm265, %v257, 0
        %v288 = vsel %vm265, %v258, 0
        %v291 = vsel %vm265, %v259, 0
        %v294 = vsel %vm265, %v260, 0
        %v297 = vsel %vm265, %v261, 0
        %v300 = vsel %vm265, %v262, 0
        %302 = vmatprep.subr.mxu0 %v264
        %303 = vmatpush1.msra.mxu0 %v263
        %304 = vmatprep.subr.mxu0 0.0
        %305 = vmatpush1.msra.mxu0 0.0
        %306 = vmatprep.subr.mxu0 0.0
        %307 = vmatpush1.msra.mxu0 0.0
        %308 = vmatprep.subr.mxu0 0.0
        %309 = vmatpush1.msra.mxu0 0.0
        %310 = vmatprep.subr.mxu0 0.0
        %311 = vmatpush1.msra.mxu0 0.0
        %312 = vmatprep.subr.mxu0 0.0
        %313 = vmatpush1.msra.mxu0 0.0
        %314 = vmatprep.subr.mxu0 0.0
        %315 = vmatpush1.msra.mxu0 0.0
        %316 = vmatprep.subr.mxu0 0.0
        %317 = vmatpush1.msra.mxu0 0.0
        %318 = vmatprep.subr.mxu0 0.0
        %319 = vmatpush1.msra.mxu0 0.0
        %320 = vmatprep.subr.mxu0 0.0
        %321 = vmatpush1.msra.mxu0 0.0
        %322 = vmatprep.subr.mxu0 0.0
        %323 = vmatpush1.msra.mxu0 0.0
        %324 = vmatprep.subr.mxu0 0.0
        %325 = vmatpush1.msra.mxu0 0.0
        %326 = vmatprep.subr.mxu0 0.0
        %327 = vmatpush1.msra.mxu0 0.0
        %328 = vmatprep.subr.mxu0 0.0
        %329 = vmatpush1.msra.mxu0 0.0
        %330 = vmatprep.subr.mxu0 0.0
        %331 = vmatpush1.msra.mxu0 0.0
        %332 = vmatprep.subr.mxu0 0.0
        %333 = vmatpush1.msra.mxu0 0.0
        %334 = vmatprep.subr.mxu0 0.0
        %335 = vmatpush1.msra.mxu0 0.0
        %336 = vmatprep.subr.mxu0 0.0
        %337 = vmatpush1.msra.mxu0 0.0
        %338 = vmatprep.subr.mxu0 0.0
        %339 = vmatpush1.msra.mxu0 0.0
        %340 = vmatprep.subr.mxu0 0.0
        %341 = vmatpush1.msra.mxu0 0.0
        %342 = vmatprep.subr.mxu0 0.0
        %343 = vmatpush1.msra.mxu0 0.0
        %344 = vmatprep.subr.mxu0 0.0
        %345 = vmatpush1.msra.mxu0 0.0
        %346 = vmatprep.subr.mxu0 0.0
        %347 = vmatpush1.msra.mxu0 0.0
        %348 = vmatprep.subr.mxu0 0.0
        %349 = vmatpush1.msra.mxu0 0.0
        %350 = vmatprep.subr.mxu0 0.0
        %351 = vmatpush1.msra.mxu0 0.0
        %352 = vmatprep.subr.mxu0 0.0
        %353 = vmatpush1.msra.mxu0 0.0
        %354 = vmatprep.subr.mxu0 0.0
        %355 = vmatpush1.msra.mxu0 0.0
        %356 = vmatprep.subr.mxu0 0.0
        %357 = vmatpush1.msra.mxu0 0.0
        %358 = vmatprep.subr.mxu0 0.0
        %359 = vmatpush1.msra.mxu0 0.0
        %360 = vmatprep.subr.mxu0 0.0
        %361 = vmatpush1.msra.mxu0 0.0
        %362 = vmatprep.subr.mxu0 0.0
        %363 = vmatpush1.msra.mxu0 0.0
        %364 = vmatprep.subr.mxu0 0.0
        %365 = vmatpush1.msra.mxu0 0.0
        %366 = vmatprep.mubr.f32.mxu0 0.0
        %367 = vmatmul.mubr.f32.gmra.mrb[0].mxu0 %v267
        %v368 = vpop.f32.mrb[0].mxu0
        %v369 = vadd.f32 0.0, %v368
        %v370 = vpop.f32.mrb[0].mxu0
        %v371 = vadd.f32 0.0, %v370
        %372 = vmatprep.mubr.f32.mxu0 0.0
        %373 = vmatmul.mubr.f32.gmra.mrb[0].mxu0 %v270
        %v374 = vpop.f32.mrb[0].mxu0
        %v375 = vadd.f32 0.0, %v374
        %v376 = vpop.f32.mrb[0].mxu0
        %v377 = vadd.f32 0.0, %v376
        %378 = vmatprep.mubr.f32.mxu0 0.0
        %379 = vmatmul.mubr.f32.gmra.mrb[0].mxu0 %v273
        %v380 = vpop.f32.mrb[0].mxu0
        %v381 = vadd.f32 0.0, %v380
        %v382 = vpop.f32.mrb[0].mxu0
        %v383 = vadd.f32 0.0, %v382
        %384 = vmatprep.mubr.f32.mxu0 0.0
        %385 = vmatmul.mubr.f32.gmra.mrb[0].mxu0 %v276
        %v386 = vpop.f32.mrb[0].mxu0
        %v387 = vadd.f32 0.0, %v386
        %v388 = vpop.f32.mrb[0].mxu0
        %v389 = vadd.f32 0.0, %v388
        %390 = vmatprep.mubr.f32.mxu0 0.0
        %391 = vmatmul.mubr.f32.gmra.mrb[0].mxu0 %v279
        %v392 = vpop.f32.mrb[0].mxu0
        %v393 = vadd.f32 0.0, %v392
        %v394 = vpop.f32.mrb[0].mxu0
        %v395 = vadd.f32 0.0, %v394
        %396 = vmatprep.mubr.f32.mxu0 0.0
        %397 = vmatmul.mubr.f32.gmra.mrb[0].mxu0 %v282
        %v398 = vpop.f32.mrb[0].mxu0
        %v399 = vadd.f32 0.0, %v398
        %v400 = vpop.f32.mrb[0].mxu0
        %v401 = vadd.f32 0.0, %v400
        %402 = vmatprep.mubr.f32.mxu0 0.0
        %403 = vmatmul.mubr.f32.gmra.mrb[0].mxu0 %v285
        %v404 = vpop.f32.mrb[0].mxu0
        %v405 = vadd.f32 0.0, %v404
        %v406 = vpop.f32.mrb[0].mxu0
        %v407 = vadd.f32 0.0, %v406
        %408 = vmatprep.mubr.f32.mxu0 0.0
        %409 = vmatmul.mubr.f32.gmra.mrb[0].mxu0 %v288
        %v410 = vpop.f32.mrb[0].mxu0
        %v411 = vadd.f32 0.0, %v410
        %v412 = vpop.f32.mrb[0].mxu0
        %v413 = vadd.f32 0.0, %v412
        %414 = vmatprep.mubr.f32.mxu0 0.0
        %415 = vmatmul.mubr.f32.gmra.mrb[0].mxu0 %v291
        %v416 = vpop.f32.mrb[0].mxu0
        %v417 = vadd.f32 0.0, %v416
        %v418 = vpop.f32.mrb[0].mxu0
        %v419 = vadd.f32 0.0, %v418
        %420 = vmatprep.mubr.f32.mxu0 0.0
        %421 = vmatmul.mubr.f32.gmra.mrb[0].mxu0 %v294
        %v422 = vpop.f32.mrb[0].mxu0
        %v423 = vadd.f32 0.0, %v422
        %v424 = vpop.f32.mrb[0].mxu0
        %v425 = vadd.f32 0.0, %v424
        %426 = vmatprep.mubr.f32.mxu0 0.0
        %427 = vmatmul.mubr.f32.gmra.mrb[0].mxu0 %v297
        %v428 = vpop.f32.mrb[0].mxu0
        %v429 = vadd.f32 0.0, %v428
        %v430 = vpop.f32.mrb[0].mxu0
        %v431 = vadd.f32 0.0, %v430
        %432 = vmatprep.mubr.f32.mxu0 0.0
        %433 = vmatmul.mubr.f32.gmra.mrb[0].mxu0 %v300
        %v434 = vpop.f32.mrb[0].mxu0
        %v435 = vadd.f32 0.0, %v434
        %v436 = vpop.f32.mrb[0].mxu0
        %v437 = vadd.f32 0.0, %v436
        %438 = vdwg.mxu0
        %v439 = vld [vmem:[%s249] sm:$0xff]
        %v440 = vld [vmem:[%s249 + $0x8] sm:$0xff]
        %v441 = vld [vmem:[%s249 + $0x10] sm:$0xff]
        %v442 = vld [vmem:[%s249 + $0x18] sm:$0xff]
        %443 = vrot.lane.b32.xlu0 %v393, 17
        %v444 = vpop.permute.xlu0 %443
        %445 = vrot.lane.b32.xlu0 %v399, 17
        %v446 = vpop.permute.xlu0 %445
        %447 = vrot.lane.b32.xlu0 %v405, 17
        %v448 = vpop.permute.xlu0 %447
        %449 = vrot.lane.b32.xlu0 %v411, 17
        %v450 = vpop.permute.xlu0 %449
        %451 = vrot.lane.b32.xlu0 %v395, 17
        %v452 = vpop.permute.xlu0 %451
        %453 = vrot.lane.b32.xlu0 %v401, 17
        %v454 = vpop.permute.xlu0 %453
        %455 = vrot.lane.b32.xlu0 %v407, 17
        %v456 = vpop.permute.xlu0 %455
        %457 = vrot.lane.b32.xlu0 %v413, 17
        %v458 = vpop.permute.xlu0 %457
        %v459 = vlaneseq
        %v460 = vand.u32 %v459, 127
        %vm461 = vcmp.lt.s32.totalorder %v460, 17
        %v462 = vsel %vm461, %v444, %v452
        %v463 = vsel %vm461, %v446, %v454
        %v464 = vsel %vm461, %v448, %v456
        %v465 = vsel %vm461, %v450, %v458
        %v466 = vsel %vm461, %v452, %v444
        %v467 = vsel %vm461, %v454, %v446
        %v468 = vsel %vm461, %v456, %v448
        %v469 = vsel %vm461, %v458, %v450
        %v470 = vld [vmem:[%s3] sm:$0x3]
        %v472 = vlaneseq
        %v473 = vshrl.u32 %v472, 7
        %v474 = vsub.s32 0, %v473
        %v475 = vrot.slane %v470, %v474
        %v476 = vlaneseq
        %v477 = vshrl.u32 %v476, 7
        %v478 = vsub.s32 1, %v477
        %v479 = vrot.slane %v470, %v478
        %v482 = vmul.f32 %v466, %v475
        %v483 = vmul.f32 %v462, %v479
        %v484 = vmul.f32 %v467, %v475
        %v485 = vmul.f32 %v463, %v479
        %v486 = vmul.f32 %v468, %v475
        %v487 = vmul.f32 %v464, %v479
        %v488 = vmul.f32 %v469, %v475
        %v489 = vmul.f32 %v465, %v479
        %491 = vset.pattern.permute.xlu0 0
        %492 = vperm.xlu0 %491, %v439
        %v493 = vpop.permute.xlu0 %492
        %496 = vset.pattern.permute.xlu0 0
        %497 = vperm.xlu0 %496, %v440
        %v498 = vpop.permute.xlu0 %497
        %501 = vset.pattern.permute.xlu0 0
        %502 = vperm.xlu0 %501, %v441
        %v503 = vpop.permute.xlu0 %502
        %506 = vset.pattern.permute.xlu0 0
        %507 = vperm.xlu0 %506, %v442
        %v508 = vpop.permute.xlu0 %507
        %v510 = vadd.f32 %v482, %v493
        %v511 = vadd.f32 %v483, %v493
        %v512 = vadd.f32 %v484, %v498
        %v513 = vadd.f32 %v485, %v498
        %v514 = vadd.f32 %v486, %v503
        %v515 = vadd.f32 %v487, %v503
        %v516 = vadd.f32 %v488, %v508
        %v517 = vadd.f32 %v489, %v508
        %v518 = vmul.f32 %v369, %v510
        %v519 = vmul.f32 %v371, %v511
        %v520 = vmul.f32 %v375, %v512
        %v521 = vmul.f32 %v377, %v513
        %v522 = vmul.f32 %v381, %v514
        %v523 = vmul.f32 %v383, %v515
        %v524 = vmul.f32 %v387, %v516
        %v525 = vmul.f32 %v389, %v517
        %526 = vst [vmem:[#allocation2] sm:$0xff] %v518
        %527 = vst [vmem:[#allocation2 + $0x8] sm:$0xff] %v519
        %528 = vst [vmem:[#allocation2 + $0x10] sm:$0xff] %v520
        %529 = vst [vmem:[#allocation2 + $0x18] sm:$0xff] %v521
        %530 = vst [vmem:[#allocation2 + $0x20] sm:$0xff] %v522
        %531 = vst [vmem:[#allocation2 + $0x28] sm:$0xff] %v523
        %532 = vst [vmem:[#allocation2 + $0x30] sm:$0xff] %v524
        %533 = vst [vmem:[#allocation2 + $0x38] sm:$0xff] %v525
        %534 = vrot.lane.b32.xlu0 %v393, 16
        %v535 = vpop.permute.xlu0 %534
        %536 = vrot.lane.b32.xlu0 %v399, 16
        %v537 = vpop.permute.xlu0 %536
        %538 = vrot.lane.b32.xlu0 %v405, 16
        %v539 = vpop.permute.xlu0 %538
        %540 = vrot.lane.b32.xlu0 %v411, 16
        %v541 = vpop.permute.xlu0 %540
        %542 = vrot.lane.b32.xlu0 %v395, 16
        %v543 = vpop.permute.xlu0 %542
        %544 = vrot.lane.b32.xlu0 %v401, 16
        %v545 = vpop.permute.xlu0 %544
        %546 = vrot.lane.b32.xlu0 %v407, 16
        %v547 = vpop.permute.xlu0 %546
        %548 = vrot.lane.b32.xlu0 %v413, 16
        %v549 = vpop.permute.xlu0 %548
        %vm550 = vcmp.lt.s32.totalorder %v460, 16
        %v551 = vsel %vm550, %v535, %v543
        %v552 = vsel %vm550, %v537, %v545
        %v553 = vsel %vm550, %v539, %v547
        %v554 = vsel %vm550, %v541, %v549
        %v555 = vsel %vm550, %v543, %v535
        %v556 = vsel %vm550, %v545, %v537
        %v557 = vsel %vm550, %v547, %v539
        %v558 = vsel %vm550, %v549, %v541
        %s559 = scalar_lea.vmem %s3, 2
        %v560 = vld [vmem:[%s559] sm:$0x3]
        %v562 = vlaneseq
        %v563 = vshrl.u32 %v562, 7
        %v564 = vsub.s32 0, %v563
        %v565 = vrot.slane %v560, %v564
        %v566 = vlaneseq
        %v567 = vshrl.u32 %v566, 7
        %v568 = vsub.s32 1, %v567
        %v569 = vrot.slane %v560, %v568
        %v572 = vmul.f32 %v555, %v565
        %v573 = vmul.f32 %v551, %v569
        %v574 = vmul.f32 %v556, %v565
        %v575 = vmul.f32 %v552, %v569
        %v576 = vmul.f32 %v557, %v565
        %v577 = vmul.f32 %v553, %v569
        %v578 = vmul.f32 %v558, %v565
        %v579 = vmul.f32 %v554, %v569
        %580 = vset.pattern.permute.xlu0 1
        %581 = vperm.xlu0 %580, %v439
        %v582 = vpop.permute.xlu0 %581
        %584 = vset.pattern.permute.xlu0 1
        %585 = vperm.xlu0 %584, %v440
        %v586 = vpop.permute.xlu0 %585
        %588 = vset.pattern.permute.xlu0 1
        %589 = vperm.xlu0 %588, %v441
        %v590 = vpop.permute.xlu0 %589
        %592 = vset.pattern.permute.xlu0 1
        %593 = vperm.xlu0 %592, %v442
        %v594 = vpop.permute.xlu0 %593
        %v596 = vadd.f32 %v572, %v582
        %v597 = vadd.f32 %v573, %v582
        %v598 = vadd.f32 %v574, %v586
        %v599 = vadd.f32 %v575, %v586
        %v600 = vadd.f32 %v576, %v590
        %v601 = vadd.f32 %v577, %v590
        %v602 = vadd.f32 %v578, %v594
        %v603 = vadd.f32 %v579, %v594
        %v604 = vmul.f32 %v369, %v596
        %v605 = vmul.f32 %v371, %v597
        %v606 = vmul.f32 %v375, %v598
        %v607 = vmul.f32 %v377, %v599
        %v608 = vmul.f32 %v381, %v600
        %v609 = vmul.f32 %v383, %v601
        %v610 = vmul.f32 %v387, %v602
        %v611 = vmul.f32 %v389, %v603
        %s612 = scalar_lea.vmem [#allocation2], 64
        %613 = vst [vmem:[%s612] sm:$0xff] %v604
        %614 = vst [vmem:[%s612 + $0x8] sm:$0xff] %v605
        %615 = vst [vmem:[%s612 + $0x10] sm:$0xff] %v606
        %616 = vst [vmem:[%s612 + $0x18] sm:$0xff] %v607
        %617 = vst [vmem:[%s612 + $0x20] sm:$0xff] %v608
        %618 = vst [vmem:[%s612 + $0x28] sm:$0xff] %v609
        %619 = vst [vmem:[%s612 + $0x30] sm:$0xff] %v610
        %620 = vst [vmem:[%s612 + $0x38] sm:$0xff] %v611
        %v621 = vmax.f32 %v518, %v604
        %v622 = vmax.f32 %v519, %v605
        %v623 = vmax.f32 %v520, %v606
        %v624 = vmax.f32 %v521, %v607
        %v625 = vmax.f32 %v522, %v608
        %v626 = vmax.f32 %v523, %v609
        %v627 = vmax.f32 %v524, %v610
        %v628 = vmax.f32 %v525, %v611
        %629 = vrot.lane.b32.xlu0 %v393, 15
        %v630 = vpop.permute.xlu0 %629
        %631 = vrot.lane.b32.xlu0 %v399, 15
        %v632 = vpop.permute.xlu0 %631
        %633 = vrot.lane.b32.xlu0 %v405, 15
        %v634 = vpop.permute.xlu0 %633
        %635 = vrot.lane.b32.xlu0 %v411, 15
        %v636 = vpop.permute.xlu0 %635
        %637 = vrot.lane.b32.xlu0 %v395, 15
        %v638 = vpop.permute.xlu0 %637
        %639 = vrot.lane.b32.xlu0 %v401, 15
        %v640 = vpop.permute.xlu0 %639
        %641 = vrot.lane.b32.xlu0 %v407, 15
        %v642 = vpop.permute.xlu0 %641
        %643 = vrot.lane.b32.xlu0 %v413, 15
        %v644 = vpop.permute.xlu0 %643
        %vm645 = vcmp.lt.s32.totalorder %v460, 15
        %v646 = vsel %vm645, %v630, %v638
        %v647 = vsel %vm645, %v632, %v640
        %v648 = vsel %vm645, %v634, %v642
        %v649 = vsel %vm645, %v636, %v644
        %v650 = vsel %vm645, %v638, %v630
        %v651 = vsel %vm645, %v640, %v632
        %v652 = vsel %vm645, %v642, %v634
        %v653 = vsel %vm645, %v644, %v636
        %s654 = scalar_lea.vmem %s3, 4
        %v655 = vld [vmem:[%s654] sm:$0x3]
        %v657 = vlaneseq
        %v658 = vshrl.u32 %v657, 7
        %v659 = vsub.s32 0, %v658
        %v660 = vrot.slane %v655, %v659
        %v661 = vlaneseq
        %v662 = vshrl.u32 %v661, 7
        %v663 = vsub.s32 1, %v662
        %v664 = vrot.slane %v655, %v663
        %v667 = vmul.f32 %v650, %v660
        %v668 = vmul.f32 %v646, %v664
        %v669 = vmul.f32 %v651, %v660
        %v670 = vmul.f32 %v647, %v664
        %v671 = vmul.f32 %v652, %v660
        %v672 = vmul.f32 %v648, %v664
        %v673 = vmul.f32 %v653, %v660
        %v674 = vmul.f32 %v649, %v664
        %675 = vset.pattern.permute.xlu0 2
        %676 = vperm.xlu0 %675, %v439
        %v677 = vpop.permute.xlu0 %676
        %679 = vset.pattern.permute.xlu0 2
        %680 = vperm.xlu0 %679, %v440
        %v681 = vpop.permute.xlu0 %680
        %683 = vset.pattern.permute.xlu0 2
        %684 = vperm.xlu0 %683, %v441
        %v685 = vpop.permute.xlu0 %684
        %687 = vset.pattern.permute.xlu0 2
        %688 = vperm.xlu0 %687, %v442
        %v689 = vpop.permute.xlu0 %688
        %v691 = vadd.f32 %v667, %v677
        %v692 = vadd.f32 %v668, %v677
        %v693 = vadd.f32 %v669, %v681
        %v694 = vadd.f32 %v670, %v681
        %v695 = vadd.f32 %v671, %v685
        %v696 = vadd.f32 %v672, %v685
        %v697 = vadd.f32 %v673, %v689
        %v698 = vadd.f32 %v674, %v689
        %v699 = vmul.f32 %v369, %v691
        %v700 = vmul.f32 %v371, %v692
        %v701 = vmul.f32 %v375, %v693
        %v702 = vmul.f32 %v377, %v694
        %v703 = vmul.f32 %v381, %v695
        %v704 = vmul.f32 %v383, %v696
        %v705 = vmul.f32 %v387, %v697
        %v706 = vmul.f32 %v389, %v698
        %s707 = scalar_lea.vmem [#allocation2], 128
        %708 = vst [vmem:[%s707] sm:$0xff] %v699
        %709 = vst [vmem:[%s707 + $0x8] sm:$0xff] %v700
        %710 = vst [vmem:[%s707 + $0x10] sm:$0xff] %v701
        %711 = vst [vmem:[%s707 + $0x18] sm:$0xff] %v702
        %712 = vst [vmem:[%s707 + $0x20] sm:$0xff] %v703
        %713 = vst [vmem:[%s707 + $0x28] sm:$0xff] %v704
        %714 = vst [vmem:[%s707 + $0x30] sm:$0xff] %v705
        %715 = vst [vmem:[%s707 + $0x38] sm:$0xff] %v706
        %v716 = vmax.f32 %v621, %v699
        %v717 = vmax.f32 %v622, %v700
        %v718 = vmax.f32 %v623, %v701
        %v719 = vmax.f32 %v624, %v702
        %v720 = vmax.f32 %v625, %v703
        %v721 = vmax.f32 %v626, %v704
        %v722 = vmax.f32 %v627, %v705
        %v723 = vmax.f32 %v628, %v706
        %724 = vrot.lane.b32.xlu0 %v393, 1
        %v725 = vpop.permute.xlu0 %724
        %726 = vrot.lane.b32.xlu0 %v399, 1
        %v727 = vpop.permute.xlu0 %726
        %728 = vrot.lane.b32.xlu0 %v405, 1
        %v729 = vpop.permute.xlu0 %728
        %730 = vrot.lane.b32.xlu0 %v411, 1
        %v731 = vpop.permute.xlu0 %730
        %732 = vrot.lane.b32.xlu0 %v395, 1
        %v733 = vpop.permute.xlu0 %732
        %734 = vrot.lane.b32.xlu0 %v401, 1
        %v735 = vpop.permute.xlu0 %734
        %736 = vrot.lane.b32.xlu0 %v407, 1
        %v737 = vpop.permute.xlu0 %736
        %738 = vrot.lane.b32.xlu0 %v413, 1
        %v739 = vpop.permute.xlu0 %738
        %vm740 = vcmp.lt.s32.totalorder %v460, 1
        %v741 = vsel %vm740, %v725, %v733
        %v742 = vsel %vm740, %v727, %v735
        %v743 = vsel %vm740, %v729, %v737
        %v744 = vsel %vm740, %v731, %v739
        %v745 = vsel %vm740, %v733, %v725
        %v746 = vsel %vm740, %v735, %v727
        %v747 = vsel %vm740, %v737, %v729
        %v748 = vsel %vm740, %v739, %v731
        %s749 = scalar_lea.vmem %s3, 6
        %v750 = vld [vmem:[%s749] sm:$0x3]
        %v752 = vlaneseq
        %v753 = vshrl.u32 %v752, 7
        %v754 = vsub.s32 0, %v753
        %v755 = vrot.slane %v750, %v754
        %v756 = vlaneseq
        %v757 = vshrl.u32 %v756, 7
        %v758 = vsub.s32 1, %v757
        %v759 = vrot.slane %v750, %v758
        %v762 = vmul.f32 %v745, %v755
        %v763 = vmul.f32 %v741, %v759
        %v764 = vmul.f32 %v746, %v755
        %v765 = vmul.f32 %v742, %v759
        %v766 = vmul.f32 %v747, %v755
        %v767 = vmul.f32 %v743, %v759
        %v768 = vmul.f32 %v748, %v755
        %v769 = vmul.f32 %v744, %v759
        %770 = vset.pattern.permute.xlu0 3
        %771 = vperm.xlu0 %770, %v439
        %v772 = vpop.permute.xlu0 %771
        %774 = vset.pattern.permute.xlu0 3
        %775 = vperm.xlu0 %774, %v440
        %v776 = vpop.permute.xlu0 %775
        %778 = vset.pattern.permute.xlu0 3
        %779 = vperm.xlu0 %778, %v441
        %v780 = vpop.permute.xlu0 %779
        %782 = vset.pattern.permute.xlu0 3
        %783 = vperm.xlu0 %782, %v442
        %v784 = vpop.permute.xlu0 %783
        %v786 = vadd.f32 %v762, %v772
        %v787 = vadd.f32 %v763, %v772
        %v788 = vadd.f32 %v764, %v776
        %v789 = vadd.f32 %v765, %v776
        %v790 = vadd.f32 %v766, %v780
        %v791 = vadd.f32 %v767, %v780
        %v792 = vadd.f32 %v768, %v784
        %v793 = vadd.f32 %v769, %v784
        %v794 = vmul.f32 %v369, %v786
        %v795 = vmul.f32 %v371, %v787
        %v796 = vmul.f32 %v375, %v788
        %v797 = vmul.f32 %v377, %v789
        %v798 = vmul.f32 %v381, %v790
        %v799 = vmul.f32 %v383, %v791
        %v800 = vmul.f32 %v387, %v792
        %v801 = vmul.f32 %v389, %v793
        %s802 = scalar_lea.vmem [#allocation2], 192
        %803 = vst [vmem:[%s802] sm:$0xff] %v794
        %804 = vst [vmem:[%s802 + $0x8] sm:$0xff] %v795
        %805 = vst [vmem:[%s802 + $0x10] sm:$0xff] %v796
        %806 = vst [vmem:[%s802 + $0x18] sm:$0xff] %v797
        %807 = vst [vmem:[%s802 + $0x20] sm:$0xff] %v798
        %808 = vst [vmem:[%s802 + $0x28] sm:$0xff] %v799
        %809 = vst [vmem:[%s802 + $0x30] sm:$0xff] %v800
        %810 = vst [vmem:[%s802 + $0x38] sm:$0xff] %v801
        %v811 = vmax.f32 %v716, %v794
        %v812 = vmax.f32 %v717, %v795
        %v813 = vmax.f32 %v718, %v796
        %v814 = vmax.f32 %v719, %v797
        %v815 = vmax.f32 %v720, %v798
        %v816 = vmax.f32 %v721, %v799
        %v817 = vmax.f32 %v722, %v800
        %v818 = vmax.f32 %v723, %v801
        %819 = vset.pattern.permute.xlu0 4
        %820 = vperm.xlu0 %819, %v439
        %v821 = vpop.permute.xlu0 %820
        %823 = vset.pattern.permute.xlu0 4
        %824 = vperm.xlu0 %823, %v440
        %v825 = vpop.permute.xlu0 %824
        %827 = vset.pattern.permute.xlu0 4
        %828 = vperm.xlu0 %827, %v441
        %v829 = vpop.permute.xlu0 %828
        %831 = vset.pattern.permute.xlu0 4
        %832 = vperm.xlu0 %831, %v442
        %v833 = vpop.permute.xlu0 %832
        %v835 = vadd.f32 %v393, %v821
        %v836 = vadd.f32 %v395, %v821
        %v837 = vadd.f32 %v399, %v825
        %v838 = vadd.f32 %v401, %v825
        %v839 = vadd.f32 %v405, %v829
        %v840 = vadd.f32 %v407, %v829
        %v841 = vadd.f32 %v411, %v833
        %v842 = vadd.f32 %v413, %v833
        %v843 = vmul.f32 %v369, %v835
        %v844 = vmul.f32 %v371, %v836
        %v845 = vmul.f32 %v375, %v837
        %v846 = vmul.f32 %v377, %v838
        %v847 = vmul.f32 %v381, %v839
        %v848 = vmul.f32 %v383, %v840
        %v849 = vmul.f32 %v387, %v841
        %v850 = vmul.f32 %v389, %v842
        %s851 = scalar_lea.vmem [#allocation2], 256
        %852 = vst [vmem:[%s851] sm:$0xff] %v843
        %853 = vst [vmem:[%s851 + $0x8] sm:$0xff] %v844
        %854 = vst [vmem:[%s851 + $0x10] sm:$0xff] %v845
        %855 = vst [vmem:[%s851 + $0x18] sm:$0xff] %v846
        %856 = vst [vmem:[%s851 + $0x20] sm:$0xff] %v847
        %857 = vst [vmem:[%s851 + $0x28] sm:$0xff] %v848
        %858 = vst [vmem:[%s851 + $0x30] sm:$0xff] %v849
        %859 = vst [vmem:[%s851 + $0x38] sm:$0xff] %v850
        %v860 = vmax.f32 %v811, %v843
        %v861 = vmax.f32 %v812, %v844
        %v862 = vmax.f32 %v813, %v845
        %v863 = vmax.f32 %v814, %v846
        %v864 = vmax.f32 %v815, %v847
        %v865 = vmax.f32 %v816, %v848
        %v866 = vmax.f32 %v817, %v849
        %v867 = vmax.f32 %v818, %v850
        %868 = vrot.lane.b32.xlu0 %v393, 127
        %v869 = vpop.permute.xlu0 %868
        %870 = vrot.lane.b32.xlu0 %v399, 127
        %v871 = vpop.permute.xlu0 %870
        %872 = vrot.lane.b32.xlu0 %v405, 127
        %v873 = vpop.permute.xlu0 %872
        %874 = vrot.lane.b32.xlu0 %v411, 127
        %v875 = vpop.permute.xlu0 %874
        %876 = vrot.lane.b32.xlu0 %v395, 127
        %v877 = vpop.permute.xlu0 %876
        %878 = vrot.lane.b32.xlu0 %v401, 127
        %v879 = vpop.permute.xlu0 %878
        %880 = vrot.lane.b32.xlu0 %v407, 127
        %v881 = vpop.permute.xlu0 %880
        %882 = vrot.lane.b32.xlu0 %v413, 127
        %v883 = vpop.permute.xlu0 %882
        %vm884 = vcmp.lt.s32.totalorder %v460, 127
        %v885 = vsel %vm884, %v869, %v877
        %v886 = vsel %vm884, %v871, %v879
        %v887 = vsel %vm884, %v873, %v881
        %v888 = vsel %vm884, %v875, %v883
        %v889 = vsel %vm884, %v877, %v869
        %v890 = vsel %vm884, %v879, %v871
        %v891 = vsel %vm884, %v881, %v873
        %v892 = vsel %vm884, %v883, %v875
        %s893 = scalar_lea.vmem %s3, 10
        %v894 = vld [vmem:[%s893] sm:$0x3]
        %v896 = vlaneseq
        %v897 = vshrl.u32 %v896, 7
        %v898 = vsub.s32 0, %v897
        %v899 = vrot.slane %v894, %v898
        %v900 = vlaneseq
        %v901 = vshrl.u32 %v900, 7
        %v902 = vsub.s32 1, %v901
        %v903 = vrot.slane %v894, %v902
        %v906 = vmul.f32 %v885, %v899
        %v907 = vmul.f32 %v889, %v903
        %v908 = vmul.f32 %v886, %v899
        %v909 = vmul.f32 %v890, %v903
        %v910 = vmul.f32 %v887, %v899
        %v911 = vmul.f32 %v891, %v903
        %v912 = vmul.f32 %v888, %v899
        %v913 = vmul.f32 %v892, %v903
        %914 = vset.pattern.permute.xlu0 5
        %915 = vperm.xlu0 %914, %v439
        %v916 = vpop.permute.xlu0 %915
        %918 = vset.pattern.permute.xlu0 5
        %919 = vperm.xlu0 %918, %v440
        %v920 = vpop.permute.xlu0 %919
        %922 = vset.pattern.permute.xlu0 5
        %923 = vperm.xlu0 %922, %v441
        %v924 = vpop.permute.xlu0 %923
        %926 = vset.pattern.permute.xlu0 5
        %927 = vperm.xlu0 %926, %v442
        %v928 = vpop.permute.xlu0 %927
        %v930 = vadd.f32 %v906, %v916
        %v931 = vadd.f32 %v907, %v916
        %v932 = vadd.f32 %v908, %v920
        %v933 = vadd.f32 %v909, %v920
        %v934 = vadd.f32 %v910, %v924
        %v935 = vadd.f32 %v911, %v924
        %v936 = vadd.f32 %v912, %v928
        %v937 = vadd.f32 %v913, %v928
        %v938 = vmul.f32 %v369, %v930
        %v939 = vmul.f32 %v371, %v931
        %v940 = vmul.f32 %v375, %v932
        %v941 = vmul.f32 %v377, %v933
        %v942 = vmul.f32 %v381, %v934
        %v943 = vmul.f32 %v383, %v935
        %v944 = vmul.f32 %v387, %v936
        %v945 = vmul.f32 %v389, %v937
        %s946 = scalar_lea.vmem [#allocation2], 320
        %947 = vst [vmem:[%s946] sm:$0xff] %v938
        %948 = vst [vmem:[%s946 + $0x8] sm:$0xff] %v939
        %949 = vst [vmem:[%s946 + $0x10] sm:$0xff] %v940
        %950 = vst [vmem:[%s946 + $0x18] sm:$0xff] %v941
        %951 = vst [vmem:[%s946 + $0x20] sm:$0xff] %v942
        %952 = vst [vmem:[%s946 + $0x28] sm:$0xff] %v943
        %953 = vst [vmem:[%s946 + $0x30] sm:$0xff] %v944
        %954 = vst [vmem:[%s946 + $0x38] sm:$0xff] %v945
        %v955 = vmax.f32 %v860, %v938
        %v956 = vmax.f32 %v861, %v939
        %v957 = vmax.f32 %v862, %v940
        %v958 = vmax.f32 %v863, %v941
        %v959 = vmax.f32 %v864, %v942
        %v960 = vmax.f32 %v865, %v943
        %v961 = vmax.f32 %v866, %v944
        %v962 = vmax.f32 %v867, %v945
        %963 = vrot.lane.b32.xlu0 %v393, 113
        %v964 = vpop.permute.xlu0 %963
        %965 = vrot.lane.b32.xlu0 %v399, 113
        %v966 = vpop.permute.xlu0 %965
        %967 = vrot.lane.b32.xlu0 %v405, 113
        %v968 = vpop.permute.xlu0 %967
        %969 = vrot.lane.b32.xlu0 %v411, 113
        %v970 = vpop.permute.xlu0 %969
        %971 = vrot.lane.b32.xlu0 %v395, 113
        %v972 = vpop.permute.xlu0 %971
        %973 = vrot.lane.b32.xlu0 %v401, 113
        %v974 = vpop.permute.xlu0 %973
        %975 = vrot.lane.b32.xlu0 %v407, 113
        %v976 = vpop.permute.xlu0 %975
        %977 = vrot.lane.b32.xlu0 %v413, 113
        %v978 = vpop.permute.xlu0 %977
        %vm979 = vcmp.lt.s32.totalorder %v460, 113
        %v980 = vsel %vm979, %v964, %v972
        %v981 = vsel %vm979, %v966, %v974
        %v982 = vsel %vm979, %v968, %v976
        %v983 = vsel %vm979, %v970, %v978
        %v984 = vsel %vm979, %v972, %v964
        %v985 = vsel %vm979, %v974, %v966
        %v986 = vsel %vm979, %v976, %v968
        %v987 = vsel %vm979, %v978, %v970
        %s988 = scalar_lea.vmem %s3, 12
        %v989 = vld [vmem:[%s988] sm:$0x3]
        %v991 = vlaneseq
        %v992 = vshrl.u32 %v991, 7
        %v993 = vsub.s32 0, %v992
        %v994 = vrot.slane %v989, %v993
        %v995 = vlaneseq
        %v996 = vshrl.u32 %v995, 7
        %v997 = vsub.s32 1, %v996
        %v998 = vrot.slane %v989, %v997
        %v1001 = vmul.f32 %v980, %v994
        %v1002 = vmul.f32 %v984, %v998
        %v1003 = vmul.f32 %v981, %v994
        %v1004 = vmul.f32 %v985, %v998
        %v1005 = vmul.f32 %v982, %v994
        %v1006 = vmul.f32 %v986, %v998
        %v1007 = vmul.f32 %v983, %v994
        %v1008 = vmul.f32 %v987, %v998
        %1009 = vset.pattern.permute.xlu0 6
        %1010 = vperm.xlu0 %1009, %v439
        %v1011 = vpop.permute.xlu0 %1010
        %1013 = vset.pattern.permute.xlu0 6
        %1014 = vperm.xlu0 %1013, %v440
        %v1015 = vpop.permute.xlu0 %1014
        %1017 = vset.pattern.permute.xlu0 6
        %1018 = vperm.xlu0 %1017, %v441
        %v1019 = vpop.permute.xlu0 %1018
        %1021 = vset.pattern.permute.xlu0 6
        %1022 = vperm.xlu0 %1021, %v442
        %v1023 = vpop.permute.xlu0 %1022
        %v1025 = vadd.f32 %v1001, %v1011
        %v1026 = vadd.f32 %v1002, %v1011
        %v1027 = vadd.f32 %v1003, %v1015
        %v1028 = vadd.f32 %v1004, %v1015
        %v1029 = vadd.f32 %v1005, %v1019
        %v1030 = vadd.f32 %v1006, %v1019
        %v1031 = vadd.f32 %v1007, %v1023
        %v1032 = vadd.f32 %v1008, %v1023
        %v1033 = vmul.f32 %v369, %v1025
        %v1034 = vmul.f32 %v371, %v1026
        %v1035 = vmul.f32 %v375, %v1027
        %v1036 = vmul.f32 %v377, %v1028
        %v1037 = vmul.f32 %v381, %v1029
        %v1038 = vmul.f32 %v383, %v1030
        %v1039 = vmul.f32 %v387, %v1031
        %v1040 = vmul.f32 %v389, %v1032
        %s1041 = scalar_lea.vmem [#allocation2], 384
        %1042 = vst [vmem:[%s1041] sm:$0xff] %v1033
        %1043 = vst [vmem:[%s1041 + $0x8] sm:$0xff] %v1034
        %1044 = vst [vmem:[%s1041 + $0x10] sm:$0xff] %v1035
        %1045 = vst [vmem:[%s1041 + $0x18] sm:$0xff] %v1036
        %1046 = vst [vmem:[%s1041 + $0x20] sm:$0xff] %v1037
        %1047 = vst [vmem:[%s1041 + $0x28] sm:$0xff] %v1038
        %1048 = vst [vmem:[%s1041 + $0x30] sm:$0xff] %v1039
        %1049 = vst [vmem:[%s1041 + $0x38] sm:$0xff] %v1040
        %v1050 = vmax.f32 %v955, %v1033
        %v1051 = vmax.f32 %v956, %v1034
        %v1052 = vmax.f32 %v957, %v1035
        %v1053 = vmax.f32 %v958, %v1036
        %v1054 = vmax.f32 %v959, %v1037
        %v1055 = vmax.f32 %v960, %v1038
        %v1056 = vmax.f32 %v961, %v1039
        %v1057 = vmax.f32 %v962, %v1040
        %1058 = vrot.lane.b32.xlu0 %v393, 112
        %v1059 = vpop.permute.xlu0 %1058
        %1060 = vrot.lane.b32.xlu0 %v399, 112
        %v1061 = vpop.permute.xlu0 %1060
        %1062 = vrot.lane.b32.xlu0 %v405, 112
        %v1063 = vpop.permute.xlu0 %1062
        %1064 = vrot.lane.b32.xlu0 %v411, 112
        %v1065 = vpop.permute.xlu0 %1064
        %1066 = vrot.lane.b32.xlu0 %v395, 112
        %v1067 = vpop.permute.xlu0 %1066
        %1068 = vrot.lane.b32.xlu0 %v401, 112
        %v1069 = vpop.permute.xlu0 %1068
        %1070 = vrot.lane.b32.xlu0 %v407, 112
        %v1071 = vpop.permute.xlu0 %1070
        %1072 = vrot.lane.b32.xlu0 %v413, 112
        %v1073 = vpop.permute.xlu0 %1072
        %vm1074 = vcmp.lt.s32.totalorder %v460, 112
        %v1075 = vsel %vm1074, %v1059, %v1067
        %v1076 = vsel %vm1074, %v1061, %v1069
        %v1077 = vsel %vm1074, %v1063, %v1071
        %v1078 = vsel %vm1074, %v1065, %v1073
        %v1079 = vsel %vm1074, %v1067, %v1059
        %v1080 = vsel %vm1074, %v1069, %v1061
        %v1081 = vsel %vm1074, %v1071, %v1063
        %v1082 = vsel %vm1074, %v1073, %v1065
        %s1083 = scalar_lea.vmem %s3, 14
        %v1084 = vld [vmem:[%s1083] sm:$0x3]
        %v1086 = vlaneseq
        %v1087 = vshrl.u32 %v1086, 7
        %v1088 = vsub.s32 0, %v1087
        %v1089 = vrot.slane %v1084, %v1088
        %v1090 = vlaneseq
        %v1091 = vshrl.u32 %v1090, 7
        %v1092 = vsub.s32 1, %v1091
        %v1093 = vrot.slane %v1084, %v1092
        %v1096 = vmul.f32 %v1075, %v1089
        %v1097 = vmul.f32 %v1079, %v1093
        %v1098 = vmul.f32 %v1076, %v1089
        %v1099 = vmul.f32 %v1080, %v1093
        %v1100 = vmul.f32 %v1077, %v1089
        %v1101 = vmul.f32 %v1081, %v1093
        %v1102 = vmul.f32 %v1078, %v1089
        %v1103 = vmul.f32 %v1082, %v1093
        %1104 = vset.pattern.permute.xlu0 7
        %1105 = vperm.xlu0 %1104, %v439
        %v1106 = vpop.permute.xlu0 %1105
        %1108 = vset.pattern.permute.xlu0 7
        %1109 = vperm.xlu0 %1108, %v440
        %v1110 = vpop.permute.xlu0 %1109
        %1112 = vset.pattern.permute.xlu0 7
        %1113 = vperm.xlu0 %1112, %v441
        %v1114 = vpop.permute.xlu0 %1113
        %1116 = vset.pattern.permute.xlu0 7
        %1117 = vperm.xlu0 %1116, %v442
        %v1118 = vpop.permute.xlu0 %1117
        %v1120 = vadd.f32 %v1096, %v1106
        %v1121 = vadd.f32 %v1097, %v1106
        %v1122 = vadd.f32 %v1098, %v1110
        %v1123 = vadd.f32 %v1099, %v1110
        %v1124 = vadd.f32 %v1100, %v1114
        %v1125 = vadd.f32 %v1101, %v1114
        %v1126 = vadd.f32 %v1102, %v1118
        %v1127 = vadd.f32 %v1103, %v1118
        %v1128 = vmul.f32 %v369, %v1120
        %v1129 = vmul.f32 %v371, %v1121
        %v1130 = vmul.f32 %v375, %v1122
        %v1131 = vmul.f32 %v377, %v1123
        %v1132 = vmul.f32 %v381, %v1124
        %v1133 = vmul.f32 %v383, %v1125
        %v1134 = vmul.f32 %v387, %v1126
        %v1135 = vmul.f32 %v389, %v1127
        %s1136 = scalar_lea.vmem [#allocation2], 448
        %1137 = vst [vmem:[%s1136] sm:$0xff] %v1128
        %1138 = vst [vmem:[%s1136 + $0x8] sm:$0xff] %v1129
        %1139 = vst [vmem:[%s1136 + $0x10] sm:$0xff] %v1130
        %1140 = vst [vmem:[%s1136 + $0x18] sm:$0xff] %v1131
        %1141 = vst [vmem:[%s1136 + $0x20] sm:$0xff] %v1132
        %1142 = vst [vmem:[%s1136 + $0x28] sm:$0xff] %v1133
        %1143 = vst [vmem:[%s1136 + $0x30] sm:$0xff] %v1134
        %1144 = vst [vmem:[%s1136 + $0x38] sm:$0xff] %v1135
        %v1145 = vmax.f32 %v1050, %v1128
        %v1146 = vmax.f32 %v1051, %v1129
        %v1147 = vmax.f32 %v1052, %v1130
        %v1148 = vmax.f32 %v1053, %v1131
        %v1149 = vmax.f32 %v1054, %v1132
        %v1150 = vmax.f32 %v1055, %v1133
        %v1151 = vmax.f32 %v1056, %v1134
        %v1152 = vmax.f32 %v1057, %v1135
        %1153 = vrot.lane.b32.xlu0 %v393, 111
        %v1154 = vpop.permute.xlu0 %1153
        %1155 = vrot.lane.b32.xlu0 %v399, 111
        %v1156 = vpop.permute.xlu0 %1155
        %1157 = vrot.lane.b32.xlu0 %v405, 111
        %v1158 = vpop.permute.xlu0 %1157
        %1159 = vrot.lane.b32.xlu0 %v411, 111
        %v1160 = vpop.permute.xlu0 %1159
        %1161 = vrot.lane.b32.xlu0 %v395, 111
        %v1162 = vpop.permute.xlu0 %1161
        %1163 = vrot.lane.b32.xlu0 %v401, 111
        %v1164 = vpop.permute.xlu0 %1163
        %1165 = vrot.lane.b32.xlu0 %v407, 111
        %v1166 = vpop.permute.xlu0 %1165
        %1167 = vrot.lane.b32.xlu0 %v413, 111
        %v1168 = vpop.permute.xlu0 %1167
        %vm1169 = vcmp.lt.s32.totalorder %v460, 111
        %v1170 = vsel %vm1169, %v1154, %v1162
        %v1171 = vsel %vm1169, %v1156, %v1164
        %v1172 = vsel %vm1169, %v1158, %v1166
        %v1173 = vsel %vm1169, %v1160, %v1168
        %v1174 = vsel %vm1169, %v1162, %v1154
        %v1175 = vsel %vm1169, %v1164, %v1156
        %v1176 = vsel %vm1169, %v1166, %v1158
        %v1177 = vsel %vm1169, %v1168, %v1160
        %s1178 = scalar_lea.vmem %s3, 16
        %v1179 = vld [vmem:[%s1178] sm:$0x3]
        %v1181 = vlaneseq
        %v1182 = vshrl.u32 %v1181, 7
        %v1183 = vsub.s32 0, %v1182
        %v1184 = vrot.slane %v1179, %v1183
        %v1185 = vlaneseq
        %v1186 = vshrl.u32 %v1185, 7
        %v1187 = vsub.s32 1, %v1186
        %v1188 = vrot.slane %v1179, %v1187
        %v1191 = vmul.f32 %v1170, %v1184
        %v1192 = vmul.f32 %v1174, %v1188
        %v1193 = vmul.f32 %v1171, %v1184
        %v1194 = vmul.f32 %v1175, %v1188
        %v1195 = vmul.f32 %v1172, %v1184
        %v1196 = vmul.f32 %v1176, %v1188
        %v1197 = vmul.f32 %v1173, %v1184
        %v1198 = vmul.f32 %v1177, %v1188
        %1199 = vset.pattern.permute.xlu0 8
        %1200 = vperm.xlu0 %1199, %v439
        %v1201 = vpop.permute.xlu0 %1200
        %1203 = vset.pattern.permute.xlu0 8
        %1204 = vperm.xlu0 %1203, %v440
        %v1205 = vpop.permute.xlu0 %1204
        %1207 = vset.pattern.permute.xlu0 8
        %1208 = vperm.xlu0 %1207, %v441
        %v1209 = vpop.permute.xlu0 %1208
        %1211 = vset.pattern.permute.xlu0 8
        %1212 = vperm.xlu0 %1211, %v442
        %v1213 = vpop.permute.xlu0 %1212
        %v1215 = vadd.f32 %v1191, %v1201
        %v1216 = vadd.f32 %v1192, %v1201
        %v1217 = vadd.f32 %v1193, %v1205
        %v1218 = vadd.f32 %v1194, %v1205
        %v1219 = vadd.f32 %v1195, %v1209
        %v1220 = vadd.f32 %v1196, %v1209
        %v1221 = vadd.f32 %v1197, %v1213
        %v1222 = vadd.f32 %v1198, %v1213
        %v1223 = vmul.f32 %v369, %v1215
        %v1224 = vmul.f32 %v371, %v1216
        %v1225 = vmul.f32 %v375, %v1217
        %v1226 = vmul.f32 %v377, %v1218
        %v1227 = vmul.f32 %v381, %v1219
        %v1228 = vmul.f32 %v383, %v1220
        %v1229 = vmul.f32 %v387, %v1221
        %v1230 = vmul.f32 %v389, %v1222
        %s1231 = scalar_lea.vmem [#allocation2], 512
        %1232 = vst [vmem:[%s1231] sm:$0xff] %v1223
        %1233 = vst [vmem:[%s1231 + $0x8] sm:$0xff] %v1224
        %1234 = vst [vmem:[%s1231 + $0x10] sm:$0xff] %v1225
        %1235 = vst [vmem:[%s1231 + $0x18] sm:$0xff] %v1226
        %1236 = vst [vmem:[%s1231 + $0x20] sm:$0xff] %v1227
        %1237 = vst [vmem:[%s1231 + $0x28] sm:$0xff] %v1228
        %1238 = vst [vmem:[%s1231 + $0x30] sm:$0xff] %v1229
        %1239 = vst [vmem:[%s1231 + $0x38] sm:$0xff] %v1230
        %v1240 = vmax.f32 %v1145, %v1223
        %v1241 = vmax.f32 %v1146, %v1224
        %v1242 = vmax.f32 %v1147, %v1225
        %v1243 = vmax.f32 %v1148, %v1226
        %v1244 = vmax.f32 %v1149, %v1227
        %v1245 = vmax.f32 %v1150, %v1228
        %v1246 = vmax.f32 %v1151, %v1229
        %v1247 = vmax.f32 %v1152, %v1230
        %v1248 = vld [vmem:[#allocation2] sm:$0xff]
        %v1249 = vld [vmem:[#allocation2 + $0x8] sm:$0xff]
        %v1250 = vld [vmem:[#allocation2 + $0x10] sm:$0xff]
        %v1251 = vld [vmem:[#allocation2 + $0x18] sm:$0xff]
        %v1252 = vld [vmem:[#allocation2 + $0x20] sm:$0xff]
        %v1253 = vld [vmem:[#allocation2 + $0x28] sm:$0xff]
        %v1254 = vld [vmem:[#allocation2 + $0x30] sm:$0xff]
        %v1255 = vld [vmem:[#allocation2 + $0x38] sm:$0xff]
        %v1256 = vsub.f32 %v1248, %v1240
        %v1257 = vsub.f32 %v1249, %v1241
        %v1258 = vsub.f32 %v1250, %v1242
        %v1259 = vsub.f32 %v1251, %v1243
        %v1260 = vsub.f32 %v1252, %v1244
        %v1261 = vsub.f32 %v1253, %v1245
        %v1262 = vsub.f32 %v1254, %v1246
        %v1263 = vsub.f32 %v1255, %v1247
        %v1264 = vmul.f32 %v1256, 1.442695
        %v1265 = vpow.pop %v1264
        %v1266 = vmul.f32 %v1257, 1.442695
        %v1267 = vpow.pop %v1266
        %v1268 = vmul.f32 %v1258, 1.442695
        %v1269 = vpow.pop %v1268
        %v1270 = vmul.f32 %v1259, 1.442695
        %v1271 = vpow.pop %v1270
        %v1272 = vmul.f32 %v1260, 1.442695
        %v1273 = vpow.pop %v1272
        %v1274 = vmul.f32 %v1261, 1.442695
        %v1275 = vpow.pop %v1274
        %v1276 = vmul.f32 %v1262, 1.442695
        %v1277 = vpow.pop %v1276
        %v1278 = vmul.f32 %v1263, 1.442695
        %v1279 = vpow.pop %v1278
        %1280 = vrot.lane.b32.xlu0 %v417, 17
        %v1281 = vpop.permute.xlu0 %1280
        %1282 = vrot.lane.b32.xlu0 %v423, 17
        %v1283 = vpop.permute.xlu0 %1282
        %1284 = vrot.lane.b32.xlu0 %v429, 17
        %v1285 = vpop.permute.xlu0 %1284
        %1286 = vrot.lane.b32.xlu0 %v435, 17
        %v1287 = vpop.permute.xlu0 %1286
        %1288 = vrot.lane.b32.xlu0 %v419, 17
        %v1289 = vpop.permute.xlu0 %1288
        %1290 = vrot.lane.b32.xlu0 %v425, 17
        %v1291 = vpop.permute.xlu0 %1290
        %1292 = vrot.lane.b32.xlu0 %v431, 17
        %v1293 = vpop.permute.xlu0 %1292
        %1294 = vrot.lane.b32.xlu0 %v437, 17
        %v1295 = vpop.permute.xlu0 %1294
        %v1296 = vsel %vm461, %v1281, %v1289
        %v1297 = vsel %vm461, %v1283, %v1291
        %v1298 = vsel %vm461, %v1285, %v1293
        %v1299 = vsel %vm461, %v1287, %v1295
        %v1300 = vsel %vm461, %v1289, %v1281
        %v1301 = vsel %vm461, %v1291, %v1283
        %v1302 = vsel %vm461, %v1293, %v1285
        %v1303 = vsel %vm461, %v1295, %v1287
        %v1304 = vld [vmem:[%s3] sm:$0x3]
        %v1306 = vlaneseq
        %v1307 = vshrl.u32 %v1306, 7
        %v1308 = vsub.s32 0, %v1307
        %v1309 = vrot.slane %v1304, %v1308
        %v1310 = vlaneseq
        %v1311 = vshrl.u32 %v1310, 7
        %v1312 = vsub.s32 1, %v1311
        %v1313 = vrot.slane %v1304, %v1312
        %v1316 = vmul.f32 %v1265, %v1309
        %v1317 = vmul.f32 %v1267, %v1313
        %v1318 = vmul.f32 %v1269, %v1309
        %v1319 = vmul.f32 %v1271, %v1313
        %v1320 = vmul.f32 %v1273, %v1309
        %v1321 = vmul.f32 %v1275, %v1313
        %v1322 = vmul.f32 %v1277, %v1309
        %v1323 = vmul.f32 %v1279, %v1313
        %v1324 = vmul.f32 %v1316, %v1300
        %v1325 = vmul.f32 %v1317, %v1296
        %v1326 = vmul.f32 %v1318, %v1301
        %v1327 = vmul.f32 %v1319, %v1297
        %v1328 = vmul.f32 %v1320, %v1302
        %v1329 = vmul.f32 %v1321, %v1298
        %v1330 = vmul.f32 %v1322, %v1303
        %v1331 = vmul.f32 %v1323, %v1299
        %v1332 = vld [vmem:[%s612] sm:$0xff]
        %v1333 = vld [vmem:[%s612 + $0x8] sm:$0xff]
        %v1334 = vld [vmem:[%s612 + $0x10] sm:$0xff]
        %v1335 = vld [vmem:[%s612 + $0x18] sm:$0xff]
        %v1336 = vld [vmem:[%s612 + $0x20] sm:$0xff]
        %v1337 = vld [vmem:[%s612 + $0x28] sm:$0xff]
        %v1338 = vld [vmem:[%s612 + $0x30] sm:$0xff]
        %v1339 = vld [vmem:[%s612 + $0x38] sm:$0xff]
        %v1340 = vsub.f32 %v1332, %v1240
        %v1341 = vsub.f32 %v1333, %v1241
        %v1342 = vsub.f32 %v1334, %v1242
        %v1343 = vsub.f32 %v1335, %v1243
        %v1344 = vsub.f32 %v1336, %v1244
        %v1345 = vsub.f32 %v1337, %v1245
        %v1346 = vsub.f32 %v1338, %v1246
        %v1347 = vsub.f32 %v1339, %v1247
        %v1348 = vmul.f32 %v1340, 1.442695
        %v1349 = vpow.pop %v1348
        %v1350 = vmul.f32 %v1341, 1.442695
        %v1351 = vpow.pop %v1350
        %v1352 = vmul.f32 %v1342, 1.442695
        %v1353 = vpow.pop %v1352
        %v1354 = vmul.f32 %v1343, 1.442695
        %v1355 = vpow.pop %v1354
        %v1356 = vmul.f32 %v1344, 1.442695
        %v1357 = vpow.pop %v1356
        %v1358 = vmul.f32 %v1345, 1.442695
        %v1359 = vpow.pop %v1358
        %v1360 = vmul.f32 %v1346, 1.442695
        %v1361 = vpow.pop %v1360
        %v1362 = vmul.f32 %v1347, 1.442695
        %v1363 = vpow.pop %v1362
        %1364 = vrot.lane.b32.xlu0 %v417, 16
        %v1365 = vpop.permute.xlu0 %1364
        %1366 = vrot.lane.b32.xlu0 %v423, 16
        %v1367 = vpop.permute.xlu0 %1366
        %1368 = vrot.lane.b32.xlu0 %v429, 16
        %v1369 = vpop.permute.xlu0 %1368
        %1370 = vrot.lane.b32.xlu0 %v435, 16
        %v1371 = vpop.permute.xlu0 %1370
        %1372 = vrot.lane.b32.xlu0 %v419, 16
        %v1373 = vpop.permute.xlu0 %1372
        %1374 = vrot.lane.b32.xlu0 %v425, 16
        %v1375 = vpop.permute.xlu0 %1374
        %1376 = vrot.lane.b32.xlu0 %v431, 16
        %v1377 = vpop.permute.xlu0 %1376
        %1378 = vrot.lane.b32.xlu0 %v437, 16
        %v1379 = vpop.permute.xlu0 %1378
        %v1380 = vsel %vm550, %v1365, %v1373
        %v1381 = vsel %vm550, %v1367, %v1375
        %v1382 = vsel %vm550, %v1369, %v1377
        %v1383 = vsel %vm550, %v1371, %v1379
        %v1384 = vsel %vm550, %v1373, %v1365
        %v1385 = vsel %vm550, %v1375, %v1367
        %v1386 = vsel %vm550, %v1377, %v1369
        %v1387 = vsel %vm550, %v1379, %v1371
        %v1388 = vld [vmem:[%s559] sm:$0x3]
        %v1390 = vlaneseq
        %v1391 = vshrl.u32 %v1390, 7
        %v1392 = vsub.s32 0, %v1391
        %v1393 = vrot.slane %v1388, %v1392
        %v1394 = vlaneseq
        %v1395 = vshrl.u32 %v1394, 7
        %v1396 = vsub.s32 1, %v1395
        %v1397 = vrot.slane %v1388, %v1396
        %v1400 = vmul.f32 %v1349, %v1393
        %v1401 = vmul.f32 %v1351, %v1397
        %v1402 = vmul.f32 %v1353, %v1393
        %v1403 = vmul.f32 %v1355, %v1397
        %v1404 = vmul.f32 %v1357, %v1393
        %v1405 = vmul.f32 %v1359, %v1397
        %v1406 = vmul.f32 %v1361, %v1393
        %v1407 = vmul.f32 %v1363, %v1397
        %v1408 = vmul.f32 %v1400, %v1384
        %v1409 = vmul.f32 %v1401, %v1380
        %v1410 = vmul.f32 %v1402, %v1385
        %v1411 = vmul.f32 %v1403, %v1381
        %v1412 = vmul.f32 %v1404, %v1386
        %v1413 = vmul.f32 %v1405, %v1382
        %v1414 = vmul.f32 %v1406, %v1387
        %v1415 = vmul.f32 %v1407, %v1383
        %v1416 = vadd.f32 %v1265, %v1349
        %v1417 = vadd.f32 %v1267, %v1351
        %v1418 = vadd.f32 %v1269, %v1353
        %v1419 = vadd.f32 %v1271, %v1355
        %v1420 = vadd.f32 %v1273, %v1357
        %v1421 = vadd.f32 %v1275, %v1359
        %v1422 = vadd.f32 %v1277, %v1361
        %v1423 = vadd.f32 %v1279, %v1363
        %v1424 = vadd.f32 %v1324, %v1408
        %v1425 = vadd.f32 %v1325, %v1409
        %v1426 = vadd.f32 %v1326, %v1410
        %v1427 = vadd.f32 %v1327, %v1411
        %v1428 = vadd.f32 %v1328, %v1412
        %v1429 = vadd.f32 %v1329, %v1413
        %v1430 = vadd.f32 %v1330, %v1414
        %v1431 = vadd.f32 %v1331, %v1415
        %v1432 = vld [vmem:[%s707] sm:$0xff]
        %v1433 = vld [vmem:[%s707 + $0x8] sm:$0xff]
        %v1434 = vld [vmem:[%s707 + $0x10] sm:$0xff]
        %v1435 = vld [vmem:[%s707 + $0x18] sm:$0xff]
        %v1436 = vld [vmem:[%s707 + $0x20] sm:$0xff]
        %v1437 = vld [vmem:[%s707 + $0x28] sm:$0xff]
        %v1438 = vld [vmem:[%s707 + $0x30] sm:$0xff]
        %v1439 = vld [vmem:[%s707 + $0x38] sm:$0xff]
        %v1440 = vsub.f32 %v1432, %v1240
        %v1441 = vsub.f32 %v1433, %v1241
        %v1442 = vsub.f32 %v1434, %v1242
        %v1443 = vsub.f32 %v1435, %v1243
        %v1444 = vsub.f32 %v1436, %v1244
        %v1445 = vsub.f32 %v1437, %v1245
        %v1446 = vsub.f32 %v1438, %v1246
        %v1447 = vsub.f32 %v1439, %v1247
        %v1448 = vmul.f32 %v1440, 1.442695
        %v1449 = vpow.pop %v1448
        %v1450 = vmul.f32 %v1441, 1.442695
        %v1451 = vpow.pop %v1450
        %v1452 = vmul.f32 %v1442, 1.442695
        %v1453 = vpow.pop %v1452
        %v1454 = vmul.f32 %v1443, 1.442695
        %v1455 = vpow.pop %v1454
        %v1456 = vmul.f32 %v1444, 1.442695
        %v1457 = vpow.pop %v1456
        %v1458 = vmul.f32 %v1445, 1.442695
        %v1459 = vpow.pop %v1458
        %v1460 = vmul.f32 %v1446, 1.442695
        %v1461 = vpow.pop %v1460
        %v1462 = vmul.f32 %v1447, 1.442695
        %v1463 = vpow.pop %v1462
        %1464 = vrot.lane.b32.xlu0 %v417, 15
        %v1465 = vpop.permute.xlu0 %1464
        %1466 = vrot.lane.b32.xlu0 %v423, 15
        %v1467 = vpop.permute.xlu0 %1466
        %1468 = vrot.lane.b32.xlu0 %v429, 15
        %v1469 = vpop.permute.xlu0 %1468
        %1470 = vrot.lane.b32.xlu0 %v435, 15
        %v1471 = vpop.permute.xlu0 %1470
        %1472 = vrot.lane.b32.xlu0 %v419, 15
        %v1473 = vpop.permute.xlu0 %1472
        %1474 = vrot.lane.b32.xlu0 %v425, 15
        %v1475 = vpop.permute.xlu0 %1474
        %1476 = vrot.lane.b32.xlu0 %v431, 15
        %v1477 = vpop.permute.xlu0 %1476
        %1478 = vrot.lane.b32.xlu0 %v437, 15
        %v1479 = vpop.permute.xlu0 %1478
        %v1480 = vsel %vm645, %v1465, %v1473
        %v1481 = vsel %vm645, %v1467, %v1475
        %v1482 = vsel %vm645, %v1469, %v1477
        %v1483 = vsel %vm645, %v1471, %v1479
        %v1484 = vsel %vm645, %v1473, %v1465
        %v1485 = vsel %vm645, %v1475, %v1467
        %v1486 = vsel %vm645, %v1477, %v1469
        %v1487 = vsel %vm645, %v1479, %v1471
        %v1488 = vld [vmem:[%s654] sm:$0x3]
        %v1490 = vlaneseq
        %v1491 = vshrl.u32 %v1490, 7
        %v1492 = vsub.s32 0, %v1491
        %v1493 = vrot.slane %v1488, %v1492
        %v1494 = vlaneseq
        %v1495 = vshrl.u32 %v1494, 7
        %v1496 = vsub.s32 1, %v1495
        %v1497 = vrot.slane %v1488, %v1496
        %v1500 = vmul.f32 %v1449, %v1493
        %v1501 = vmul.f32 %v1451, %v1497
        %v1502 = vmul.f32 %v1453, %v1493
        %v1503 = vmul.f32 %v1455, %v1497
        %v1504 = vmul.f32 %v1457, %v1493
        %v1505 = vmul.f32 %v1459, %v1497
        %v1506 = vmul.f32 %v1461, %v1493
        %v1507 = vmul.f32 %v1463, %v1497
        %v1508 = vmul.f32 %v1500, %v1484
        %v1509 = vmul.f32 %v1501, %v1480
        %v1510 = vmul.f32 %v1502, %v1485
        %v1511 = vmul.f32 %v1503, %v1481
        %v1512 = vmul.f32 %v1504, %v1486
        %v1513 = vmul.f32 %v1505, %v1482
        %v1514 = vmul.f32 %v1506, %v1487
        %v1515 = vmul.f32 %v1507, %v1483
        %v1516 = vadd.f32 %v1416, %v1449
        %v1517 = vadd.f32 %v1417, %v1451
        %v1518 = vadd.f32 %v1418, %v1453
        %v1519 = vadd.f32 %v1419, %v1455
        %v1520 = vadd.f32 %v1420, %v1457
        %v1521 = vadd.f32 %v1421, %v1459
        %v1522 = vadd.f32 %v1422, %v1461
        %v1523 = vadd.f32 %v1423, %v1463
        %v1524 = vadd.f32 %v1424, %v1508
        %v1525 = vadd.f32 %v1425, %v1509
        %v1526 = vadd.f32 %v1426, %v1510
        %v1527 = vadd.f32 %v1427, %v1511
        %v1528 = vadd.f32 %v1428, %v1512
        %v1529 = vadd.f32 %v1429, %v1513
        %v1530 = vadd.f32 %v1430, %v1514
        %v1531 = vadd.f32 %v1431, %v1515
        %v1532 = vld [vmem:[%s802] sm:$0xff]
        %v1533 = vld [vmem:[%s802 + $0x8] sm:$0xff]
        %v1534 = vld [vmem:[%s802 + $0x10] sm:$0xff]
        %v1535 = vld [vmem:[%s802 + $0x18] sm:$0xff]
        %v1536 = vld [vmem:[%s802 + $0x20] sm:$0xff]
        %v1537 = vld [vmem:[%s802 + $0x28] sm:$0xff]
        %v1538 = vld [vmem:[%s802 + $0x30] sm:$0xff]
        %v1539 = vld [vmem:[%s802 + $0x38] sm:$0xff]
        %v1540 = vsub.f32 %v1532, %v1240
        %v1541 = vsub.f32 %v1533, %v1241
        %v1542 = vsub.f32 %v1534, %v1242
        %v1543 = vsub.f32 %v1535, %v1243
        %v1544 = vsub.f32 %v1536, %v1244
        %v1545 = vsub.f32 %v1537, %v1245
        %v1546 = vsub.f32 %v1538, %v1246
        %v1547 = vsub.f32 %v1539, %v1247
        %v1548 = vmul.f32 %v1540, 1.442695
        %v1549 = vpow.pop %v1548
        %v1550 = vmul.f32 %v1541, 1.442695
        %v1551 = vpow.pop %v1550
        %v1552 = vmul.f32 %v1542, 1.442695
        %v1553 = vpow.pop %v1552
        %v1554 = vmul.f32 %v1543, 1.442695
        %v1555 = vpow.pop %v1554
        %v1556 = vmul.f32 %v1544, 1.442695
        %v1557 = vpow.pop %v1556
        %v1558 = vmul.f32 %v1545, 1.442695
        %v1559 = vpow.pop %v1558
        %v1560 = vmul.f32 %v1546, 1.442695
        %v1561 = vpow.pop %v1560
        %v1562 = vmul.f32 %v1547, 1.442695
        %v1563 = vpow.pop %v1562
        %1564 = vrot.lane.b32.xlu0 %v417, 1
        %v1565 = vpop.permute.xlu0 %1564
        %1566 = vrot.lane.b32.xlu0 %v423, 1
        %v1567 = vpop.permute.xlu0 %1566
        %1568 = vrot.lane.b32.xlu0 %v429, 1
        %v1569 = vpop.permute.xlu0 %1568
        %1570 = vrot.lane.b32.xlu0 %v435, 1
        %v1571 = vpop.permute.xlu0 %1570
        %1572 = vrot.lane.b32.xlu0 %v419, 1
        %v1573 = vpop.permute.xlu0 %1572
        %1574 = vrot.lane.b32.xlu0 %v425, 1
        %v1575 = vpop.permute.xlu0 %1574
        %1576 = vrot.lane.b32.xlu0 %v431, 1
        %v1577 = vpop.permute.xlu0 %1576
        %1578 = vrot.lane.b32.xlu0 %v437, 1
        %v1579 = vpop.permute.xlu0 %1578
        %v1580 = vsel %vm740, %v1565, %v1573
        %v1581 = vsel %vm740, %v1567, %v1575
        %v1582 = vsel %vm740, %v1569, %v1577
        %v1583 = vsel %vm740, %v1571, %v1579
        %v1584 = vsel %vm740, %v1573, %v1565
        %v1585 = vsel %vm740, %v1575, %v1567
        %v1586 = vsel %vm740, %v1577, %v1569
        %v1587 = vsel %vm740, %v1579, %v1571
        %v1588 = vld [vmem:[%s749] sm:$0x3]
        %v1590 = vlaneseq
        %v1591 = vshrl.u32 %v1590, 7
        %v1592 = vsub.s32 0, %v1591
        %v1593 = vrot.slane %v1588, %v1592
        %v1594 = vlaneseq
        %v1595 = vshrl.u32 %v1594, 7
        %v1596 = vsub.s32 1, %v1595
        %v1597 = vrot.slane %v1588, %v1596
        %v1600 = vmul.f32 %v1549, %v1593
        %v1601 = vmul.f32 %v1551, %v1597
        %v1602 = vmul.f32 %v1553, %v1593
        %v1603 = vmul.f32 %v1555, %v1597
        %v1604 = vmul.f32 %v1557, %v1593
        %v1605 = vmul.f32 %v1559, %v1597
        %v1606 = vmul.f32 %v1561, %v1593
        %v1607 = vmul.f32 %v1563, %v1597
        %v1608 = vmul.f32 %v1600, %v1584
        %v1609 = vmul.f32 %v1601, %v1580
        %v1610 = vmul.f32 %v1602, %v1585
        %v1611 = vmul.f32 %v1603, %v1581
        %v1612 = vmul.f32 %v1604, %v1586
        %v1613 = vmul.f32 %v1605, %v1582
        %v1614 = vmul.f32 %v1606, %v1587
        %v1615 = vmul.f32 %v1607, %v1583
        %v1616 = vadd.f32 %v1516, %v1549
        %v1617 = vadd.f32 %v1517, %v1551
        %v1618 = vadd.f32 %v1518, %v1553
        %v1619 = vadd.f32 %v1519, %v1555
        %v1620 = vadd.f32 %v1520, %v1557
        %v1621 = vadd.f32 %v1521, %v1559
        %v1622 = vadd.f32 %v1522, %v1561
        %v1623 = vadd.f32 %v1523, %v1563
        %v1624 = vadd.f32 %v1524, %v1608
        %v1625 = vadd.f32 %v1525, %v1609
        %v1626 = vadd.f32 %v1526, %v1610
        %v1627 = vadd.f32 %v1527, %v1611
        %v1628 = vadd.f32 %v1528, %v1612
        %v1629 = vadd.f32 %v1529, %v1613
        %v1630 = vadd.f32 %v1530, %v1614
        %v1631 = vadd.f32 %v1531, %v1615
        %v1632 = vld [vmem:[%s851] sm:$0xff]
        %v1633 = vld [vmem:[%s851 + $0x8] sm:$0xff]
        %v1634 = vld [vmem:[%s851 + $0x10] sm:$0xff]
        %v1635 = vld [vmem:[%s851 + $0x18] sm:$0xff]
        %v1636 = vld [vmem:[%s851 + $0x20] sm:$0xff]
        %v1637 = vld [vmem:[%s851 + $0x28] sm:$0xff]
        %v1638 = vld [vmem:[%s851 + $0x30] sm:$0xff]
        %v1639 = vld [vmem:[%s851 + $0x38] sm:$0xff]
        %v1640 = vsub.f32 %v1632, %v1240
        %v1641 = vsub.f32 %v1633, %v1241
        %v1642 = vsub.f32 %v1634, %v1242
        %v1643 = vsub.f32 %v1635, %v1243
        %v1644 = vsub.f32 %v1636, %v1244
        %v1645 = vsub.f32 %v1637, %v1245
        %v1646 = vsub.f32 %v1638, %v1246
        %v1647 = vsub.f32 %v1639, %v1247
        %v1648 = vmul.f32 %v1640, 1.442695
        %v1649 = vpow.pop %v1648
        %v1650 = vmul.f32 %v1641, 1.442695
        %v1651 = vpow.pop %v1650
        %v1652 = vmul.f32 %v1642, 1.442695
        %v1653 = vpow.pop %v1652
        %v1654 = vmul.f32 %v1643, 1.442695
        %v1655 = vpow.pop %v1654
        %v1656 = vmul.f32 %v1644, 1.442695
        %v1657 = vpow.pop %v1656
        %v1658 = vmul.f32 %v1645, 1.442695
        %v1659 = vpow.pop %v1658
        %v1660 = vmul.f32 %v1646, 1.442695
        %v1661 = vpow.pop %v1660
        %v1662 = vmul.f32 %v1647, 1.442695
        %v1663 = vpow.pop %v1662
        %v1664 = vmul.f32 %v1649, %v417
        %v1665 = vmul.f32 %v1651, %v419
        %v1666 = vmul.f32 %v1653, %v423
        %v1667 = vmul.f32 %v1655, %v425
        %v1668 = vmul.f32 %v1657, %v429
        %v1669 = vmul.f32 %v1659, %v431
        %v1670 = vmul.f32 %v1661, %v435
        %v1671 = vmul.f32 %v1663, %v437
        %v1672 = vadd.f32 %v1616, %v1649
        %v1673 = vadd.f32 %v1617, %v1651
        %v1674 = vadd.f32 %v1618, %v1653
        %v1675 = vadd.f32 %v1619, %v1655
        %v1676 = vadd.f32 %v1620, %v1657
        %v1677 = vadd.f32 %v1621, %v1659
        %v1678 = vadd.f32 %v1622, %v1661
        %v1679 = vadd.f32 %v1623, %v1663
        %v1680 = vadd.f32 %v1624, %v1664
        %v1681 = vadd.f32 %v1625, %v1665
        %v1682 = vadd.f32 %v1626, %v1666
        %v1683 = vadd.f32 %v1627, %v1667
        %v1684 = vadd.f32 %v1628, %v1668
        %v1685 = vadd.f32 %v1629, %v1669
        %v1686 = vadd.f32 %v1630, %v1670
        %v1687 = vadd.f32 %v1631, %v1671
        %v1688 = vld [vmem:[%s946] sm:$0xff]
        %v1689 = vld [vmem:[%s946 + $0x8] sm:$0xff]
        %v1690 = vld [vmem:[%s946 + $0x10] sm:$0xff]
        %v1691 = vld [vmem:[%s946 + $0x18] sm:$0xff]
        %v1692 = vld [vmem:[%s946 + $0x20] sm:$0xff]
        %v1693 = vld [vmem:[%s946 + $0x28] sm:$0xff]
        %v1694 = vld [vmem:[%s946 + $0x30] sm:$0xff]
        %v1695 = vld [vmem:[%s946 + $0x38] sm:$0xff]
        %v1696 = vsub.f32 %v1688, %v1240
        %v1697 = vsub.f32 %v1689, %v1241
        %v1698 = vsub.f32 %v1690, %v1242
        %v1699 = vsub.f32 %v1691, %v1243
        %v1700 = vsub.f32 %v1692, %v1244
        %v1701 = vsub.f32 %v1693, %v1245
        %v1702 = vsub.f32 %v1694, %v1246
        %v1703 = vsub.f32 %v1695, %v1247
        %v1704 = vmul.f32 %v1696, 1.442695
        %v1705 = vpow.pop %v1704
        %v1706 = vmul.f32 %v1697, 1.442695
        %v1707 = vpow.pop %v1706
        %v1708 = vmul.f32 %v1698, 1.442695
        %v1709 = vpow.pop %v1708
        %v1710 = vmul.f32 %v1699, 1.442695
        %v1711 = vpow.pop %v1710
        %v1712 = vmul.f32 %v1700, 1.442695
        %v1713 = vpow.pop %v1712
        %v1714 = vmul.f32 %v1701, 1.442695
        %v1715 = vpow.pop %v1714
        %v1716 = vmul.f32 %v1702, 1.442695
        %v1717 = vpow.pop %v1716
        %v1718 = vmul.f32 %v1703, 1.442695
        %v1719 = vpow.pop %v1718
        %1720 = vrot.lane.b32.xlu0 %v417, 127
        %v1721 = vpop.permute.xlu0 %1720
        %1722 = vrot.lane.b32.xlu0 %v423, 127
        %v1723 = vpop.permute.xlu0 %1722
        %1724 = vrot.lane.b32.xlu0 %v429, 127
        %v1725 = vpop.permute.xlu0 %1724
        %1726 = vrot.lane.b32.xlu0 %v435, 127
        %v1727 = vpop.permute.xlu0 %1726
        %1728 = vrot.lane.b32.xlu0 %v419, 127
        %v1729 = vpop.permute.xlu0 %1728
        %1730 = vrot.lane.b32.xlu0 %v425, 127
        %v1731 = vpop.permute.xlu0 %1730
        %1732 = vrot.lane.b32.xlu0 %v431, 127
        %v1733 = vpop.permute.xlu0 %1732
        %1734 = vrot.lane.b32.xlu0 %v437, 127
        %v1735 = vpop.permute.xlu0 %1734
        %v1736 = vsel %vm884, %v1721, %v1729
        %v1737 = vsel %vm884, %v1723, %v1731
        %v1738 = vsel %vm884, %v1725, %v1733
        %v1739 = vsel %vm884, %v1727, %v1735
        %v1740 = vsel %vm884, %v1729, %v1721
        %v1741 = vsel %vm884, %v1731, %v1723
        %v1742 = vsel %vm884, %v1733, %v1725
        %v1743 = vsel %vm884, %v1735, %v1727
        %v1744 = vld [vmem:[%s893] sm:$0x3]
        %v1746 = vlaneseq
        %v1747 = vshrl.u32 %v1746, 7
        %v1748 = vsub.s32 0, %v1747
        %v1749 = vrot.slane %v1744, %v1748
        %v1750 = vlaneseq
        %v1751 = vshrl.u32 %v1750, 7
        %v1752 = vsub.s32 1, %v1751
        %v1753 = vrot.slane %v1744, %v1752
        %v1756 = vmul.f32 %v1705, %v1749
        %v1757 = vmul.f32 %v1707, %v1753
        %v1758 = vmul.f32 %v1709, %v1749
        %v1759 = vmul.f32 %v1711, %v1753
        %v1760 = vmul.f32 %v1713, %v1749
        %v1761 = vmul.f32 %v1715, %v1753
        %v1762 = vmul.f32 %v1717, %v1749
        %v1763 = vmul.f32 %v1719, %v1753
        %v1764 = vmul.f32 %v1756, %v1736
        %v1765 = vmul.f32 %v1757, %v1740
        %v1766 = vmul.f32 %v1758, %v1737
        %v1767 = vmul.f32 %v1759, %v1741
        %v1768 = vmul.f32 %v1760, %v1738
        %v1769 = vmul.f32 %v1761, %v1742
        %v1770 = vmul.f32 %v1762, %v1739
        %v1771 = vmul.f32 %v1763, %v1743
        %v1772 = vadd.f32 %v1672, %v1705
        %v1773 = vadd.f32 %v1673, %v1707
        %v1774 = vadd.f32 %v1674, %v1709
        %v1775 = vadd.f32 %v1675, %v1711
        %v1776 = vadd.f32 %v1676, %v1713
        %v1777 = vadd.f32 %v1677, %v1715
        %v1778 = vadd.f32 %v1678, %v1717
        %v1779 = vadd.f32 %v1679, %v1719
        %v1780 = vadd.f32 %v1680, %v1764
        %v1781 = vadd.f32 %v1681, %v1765
        %v1782 = vadd.f32 %v1682, %v1766
        %v1783 = vadd.f32 %v1683, %v1767
        %v1784 = vadd.f32 %v1684, %v1768
        %v1785 = vadd.f32 %v1685, %v1769
        %v1786 = vadd.f32 %v1686, %v1770
        %v1787 = vadd.f32 %v1687, %v1771
        %v1788 = vld [vmem:[%s1041] sm:$0xff]
        %v1789 = vld [vmem:[%s1041 + $0x8] sm:$0xff]
        %v1790 = vld [vmem:[%s1041 + $0x10] sm:$0xff]
        %v1791 = vld [vmem:[%s1041 + $0x18] sm:$0xff]
        %v1792 = vld [vmem:[%s1041 + $0x20] sm:$0xff]
        %v1793 = vld [vmem:[%s1041 + $0x28] sm:$0xff]
        %v1794 = vld [vmem:[%s1041 + $0x30] sm:$0xff]
        %v1795 = vld [vmem:[%s1041 + $0x38] sm:$0xff]
        %v1796 = vsub.f32 %v1788, %v1240
        %v1797 = vsub.f32 %v1789, %v1241
        %v1798 = vsub.f32 %v1790, %v1242
        %v1799 = vsub.f32 %v1791, %v1243
        %v1800 = vsub.f32 %v1792, %v1244
        %v1801 = vsub.f32 %v1793, %v1245
        %v1802 = vsub.f32 %v1794, %v1246
        %v1803 = vsub.f32 %v1795, %v1247
        %v1804 = vmul.f32 %v1796, 1.442695
        %v1805 = vpow.pop %v1804
        %v1806 = vmul.f32 %v1797, 1.442695
        %v1807 = vpow.pop %v1806
        %v1808 = vmul.f32 %v1798, 1.442695
        %v1809 = vpow.pop %v1808
        %v1810 = vmul.f32 %v1799, 1.442695
        %v1811 = vpow.pop %v1810
        %v1812 = vmul.f32 %v1800, 1.442695
        %v1813 = vpow.pop %v1812
        %v1814 = vmul.f32 %v1801, 1.442695
        %v1815 = vpow.pop %v1814
        %v1816 = vmul.f32 %v1802, 1.442695
        %v1817 = vpow.pop %v1816
        %v1818 = vmul.f32 %v1803, 1.442695
        %v1819 = vpow.pop %v1818
        %1820 = vrot.lane.b32.xlu0 %v417, 113
        %v1821 = vpop.permute.xlu0 %1820
        %1822 = vrot.lane.b32.xlu0 %v423, 113
        %v1823 = vpop.permute.xlu0 %1822
        %1824 = vrot.lane.b32.xlu0 %v429, 113
        %v1825 = vpop.permute.xlu0 %1824
        %1826 = vrot.lane.b32.xlu0 %v435, 113
        %v1827 = vpop.permute.xlu0 %1826
        %1828 = vrot.lane.b32.xlu0 %v419, 113
        %v1829 = vpop.permute.xlu0 %1828
        %1830 = vrot.lane.b32.xlu0 %v425, 113
        %v1831 = vpop.permute.xlu0 %1830
        %1832 = vrot.lane.b32.xlu0 %v431, 113
        %v1833 = vpop.permute.xlu0 %1832
        %1834 = vrot.lane.b32.xlu0 %v437, 113
        %v1835 = vpop.permute.xlu0 %1834
        %v1836 = vsel %vm979, %v1821, %v1829
        %v1837 = vsel %vm979, %v1823, %v1831
        %v1838 = vsel %vm979, %v1825, %v1833
        %v1839 = vsel %vm979, %v1827, %v1835
        %v1840 = vsel %vm979, %v1829, %v1821
        %v1841 = vsel %vm979, %v1831, %v1823
        %v1842 = vsel %vm979, %v1833, %v1825
        %v1843 = vsel %vm979, %v1835, %v1827
        %v1844 = vld [vmem:[%s988] sm:$0x3]
        %v1846 = vlaneseq
        %v1847 = vshrl.u32 %v1846, 7
        %v1848 = vsub.s32 0, %v1847
        %v1849 = vrot.slane %v1844, %v1848
        %v1850 = vlaneseq
        %v1851 = vshrl.u32 %v1850, 7
        %v1852 = vsub.s32 1, %v1851
        %v1853 = vrot.slane %v1844, %v1852
        %v1856 = vmul.f32 %v1805, %v1849
        %v1857 = vmul.f32 %v1807, %v1853
        %v1858 = vmul.f32 %v1809, %v1849
        %v1859 = vmul.f32 %v1811, %v1853
        %v1860 = vmul.f32 %v1813, %v1849
        %v1861 = vmul.f32 %v1815, %v1853
        %v1862 = vmul.f32 %v1817, %v1849
        %v1863 = vmul.f32 %v1819, %v1853
        %v1864 = vmul.f32 %v1856, %v1836
        %v1865 = vmul.f32 %v1857, %v1840
        %v1866 = vmul.f32 %v1858, %v1837
        %v1867 = vmul.f32 %v1859, %v1841
        %v1868 = vmul.f32 %v1860, %v1838
        %v1869 = vmul.f32 %v1861, %v1842
        %v1870 = vmul.f32 %v1862, %v1839
        %v1871 = vmul.f32 %v1863, %v1843
        %v1872 = vadd.f32 %v1772, %v1805
        %v1873 = vadd.f32 %v1773, %v1807
        %v1874 = vadd.f32 %v1774, %v1809
        %v1875 = vadd.f32 %v1775, %v1811
        %v1876 = vadd.f32 %v1776, %v1813
        %v1877 = vadd.f32 %v1777, %v1815
        %v1878 = vadd.f32 %v1778, %v1817
        %v1879 = vadd.f32 %v1779, %v1819
        %v1880 = vadd.f32 %v1780, %v1864
        %v1881 = vadd.f32 %v1781, %v1865
        %v1882 = vadd.f32 %v1782, %v1866
        %v1883 = vadd.f32 %v1783, %v1867
        %v1884 = vadd.f32 %v1784, %v1868
        %v1885 = vadd.f32 %v1785, %v1869
        %v1886 = vadd.f32 %v1786, %v1870
        %v1887 = vadd.f32 %v1787, %v1871
        %v1888 = vld [vmem:[%s1136] sm:$0xff]
        %v1889 = vld [vmem:[%s1136 + $0x8] sm:$0xff]
        %v1890 = vld [vmem:[%s1136 + $0x10] sm:$0xff]
        %v1891 = vld [vmem:[%s1136 + $0x18] sm:$0xff]
        %v1892 = vld [vmem:[%s1136 + $0x20] sm:$0xff]
        %v1893 = vld [vmem:[%s1136 + $0x28] sm:$0xff]
        %v1894 = vld [vmem:[%s1136 + $0x30] sm:$0xff]
        %v1895 = vld [vmem:[%s1136 + $0x38] sm:$0xff]
        %v1896 = vsub.f32 %v1888, %v1240
        %v1897 = vsub.f32 %v1889, %v1241
        %v1898 = vsub.f32 %v1890, %v1242
        %v1899 = vsub.f32 %v1891, %v1243
        %v1900 = vsub.f32 %v1892, %v1244
        %v1901 = vsub.f32 %v1893, %v1245
        %v1902 = vsub.f32 %v1894, %v1246
        %v1903 = vsub.f32 %v1895, %v1247
        %v1904 = vmul.f32 %v1896, 1.442695
        %v1905 = vpow.pop %v1904
        %v1906 = vmul.f32 %v1897, 1.442695
        %v1907 = vpow.pop %v1906
        %v1908 = vmul.f32 %v1898, 1.442695
        %v1909 = vpow.pop %v1908
        %v1910 = vmul.f32 %v1899, 1.442695
        %v1911 = vpow.pop %v1910
        %v1912 = vmul.f32 %v1900, 1.442695
        %v1913 = vpow.pop %v1912
        %v1914 = vmul.f32 %v1901, 1.442695
        %v1915 = vpow.pop %v1914
        %v1916 = vmul.f32 %v1902, 1.442695
        %v1917 = vpow.pop %v1916
        %v1918 = vmul.f32 %v1903, 1.442695
        %v1919 = vpow.pop %v1918
        %1920 = vrot.lane.b32.xlu0 %v417, 112
        %v1921 = vpop.permute.xlu0 %1920
        %1922 = vrot.lane.b32.xlu0 %v423, 112
        %v1923 = vpop.permute.xlu0 %1922
        %1924 = vrot.lane.b32.xlu0 %v429, 112
        %v1925 = vpop.permute.xlu0 %1924
        %1926 = vrot.lane.b32.xlu0 %v435, 112
        %v1927 = vpop.permute.xlu0 %1926
        %1928 = vrot.lane.b32.xlu0 %v419, 112
        %v1929 = vpop.permute.xlu0 %1928
        %1930 = vrot.lane.b32.xlu0 %v425, 112
        %v1931 = vpop.permute.xlu0 %1930
        %1932 = vrot.lane.b32.xlu0 %v431, 112
        %v1933 = vpop.permute.xlu0 %1932
        %1934 = vrot.lane.b32.xlu0 %v437, 112
        %v1935 = vpop.permute.xlu0 %1934
        %v1936 = vsel %vm1074, %v1921, %v1929
        %v1937 = vsel %vm1074, %v1923, %v1931
        %v1938 = vsel %vm1074, %v1925, %v1933
        %v1939 = vsel %vm1074, %v1927, %v1935
        %v1940 = vsel %vm1074, %v1929, %v1921
        %v1941 = vsel %vm1074, %v1931, %v1923
        %v1942 = vsel %vm1074, %v1933, %v1925
        %v1943 = vsel %vm1074, %v1935, %v1927
        %v1944 = vld [vmem:[%s1083] sm:$0x3]
        %v1946 = vlaneseq
        %v1947 = vshrl.u32 %v1946, 7
        %v1948 = vsub.s32 0, %v1947
        %v1949 = vrot.slane %v1944, %v1948
        %v1950 = vlaneseq
        %v1951 = vshrl.u32 %v1950, 7
        %v1952 = vsub.s32 1, %v1951
        %v1953 = vrot.slane %v1944, %v1952
        %v1956 = vmul.f32 %v1905, %v1949
        %v1957 = vmul.f32 %v1907, %v1953
        %v1958 = vmul.f32 %v1909, %v1949
        %v1959 = vmul.f32 %v1911, %v1953
        %v1960 = vmul.f32 %v1913, %v1949
        %v1961 = vmul.f32 %v1915, %v1953
        %v1962 = vmul.f32 %v1917, %v1949
        %v1963 = vmul.f32 %v1919, %v1953
        %v1964 = vmul.f32 %v1956, %v1936
        %v1965 = vmul.f32 %v1957, %v1940
        %v1966 = vmul.f32 %v1958, %v1937
        %v1967 = vmul.f32 %v1959, %v1941
        %v1968 = vmul.f32 %v1960, %v1938
        %v1969 = vmul.f32 %v1961, %v1942
        %v1970 = vmul.f32 %v1962, %v1939
        %v1971 = vmul.f32 %v1963, %v1943
        %v1972 = vadd.f32 %v1872, %v1905
        %v1973 = vadd.f32 %v1873, %v1907
        %v1974 = vadd.f32 %v1874, %v1909
        %v1975 = vadd.f32 %v1875, %v1911
        %v1976 = vadd.f32 %v1876, %v1913
        %v1977 = vadd.f32 %v1877, %v1915
        %v1978 = vadd.f32 %v1878, %v1917
        %v1979 = vadd.f32 %v1879, %v1919
        %v1980 = vadd.f32 %v1880, %v1964
        %v1981 = vadd.f32 %v1881, %v1965
        %v1982 = vadd.f32 %v1882, %v1966
        %v1983 = vadd.f32 %v1883, %v1967
        %v1984 = vadd.f32 %v1884, %v1968
        %v1985 = vadd.f32 %v1885, %v1969
        %v1986 = vadd.f32 %v1886, %v1970
        %v1987 = vadd.f32 %v1887, %v1971
        %v1988 = vld [vmem:[%s1231] sm:$0xff]
        %v1989 = vld [vmem:[%s1231 + $0x8] sm:$0xff]
        %v1990 = vld [vmem:[%s1231 + $0x10] sm:$0xff]
        %v1991 = vld [vmem:[%s1231 + $0x18] sm:$0xff]
        %v1992 = vld [vmem:[%s1231 + $0x20] sm:$0xff]
        %v1993 = vld [vmem:[%s1231 + $0x28] sm:$0xff]
        %v1994 = vld [vmem:[%s1231 + $0x30] sm:$0xff]
        %v1995 = vld [vmem:[%s1231 + $0x38] sm:$0xff]
        %v1996 = vsub.f32 %v1988, %v1240
        %v1997 = vsub.f32 %v1989, %v1241
        %v1998 = vsub.f32 %v1990, %v1242
        %v1999 = vsub.f32 %v1991, %v1243
        %v2000 = vsub.f32 %v1992, %v1244
        %v2001 = vsub.f32 %v1993, %v1245
        %v2002 = vsub.f32 %v1994, %v1246
        %v2003 = vsub.f32 %v1995, %v1247
        %v2004 = vmul.f32 %v1996, 1.442695
        %v2005 = vpow.pop %v2004
        %v2006 = vmul.f32 %v1997, 1.442695
        %v2007 = vpow.pop %v2006
        %v2008 = vmul.f32 %v1998, 1.442695
        %v2009 = vpow.pop %v2008
        %v2010 = vmul.f32 %v1999, 1.442695
        %v2011 = vpow.pop %v2010
        %v2012 = vmul.f32 %v2000, 1.442695
        %v2013 = vpow.pop %v2012
        %v2014 = vmul.f32 %v2001, 1.442695
        %v2015 = vpow.pop %v2014
        %v2016 = vmul.f32 %v2002, 1.442695
        %v2017 = vpow.pop %v2016
        %v2018 = vmul.f32 %v2003, 1.442695
        %v2019 = vpow.pop %v2018
        %2020 = vrot.lane.b32.xlu0 %v417, 111
        %v2021 = vpop.permute.xlu0 %2020
        %2022 = vrot.lane.b32.xlu0 %v423, 111
        %v2023 = vpop.permute.xlu0 %2022
        %2024 = vrot.lane.b32.xlu0 %v429, 111
        %v2025 = vpop.permute.xlu0 %2024
        %2026 = vrot.lane.b32.xlu0 %v435, 111
        %v2027 = vpop.permute.xlu0 %2026
        %2028 = vrot.lane.b32.xlu0 %v419, 111
        %v2029 = vpop.permute.xlu0 %2028
        %2030 = vrot.lane.b32.xlu0 %v425, 111
        %v2031 = vpop.permute.xlu0 %2030
        %2032 = vrot.lane.b32.xlu0 %v431, 111
        %v2033 = vpop.permute.xlu0 %2032
        %2034 = vrot.lane.b32.xlu0 %v437, 111
        %v2035 = vpop.permute.xlu0 %2034
        %v2036 = vsel %vm1169, %v2021, %v2029
        %v2037 = vsel %vm1169, %v2023, %v2031
        %v2038 = vsel %vm1169, %v2025, %v2033
        %v2039 = vsel %vm1169, %v2027, %v2035
        %v2040 = vsel %vm1169, %v2029, %v2021
        %v2041 = vsel %vm1169, %v2031, %v2023
        %v2042 = vsel %vm1169, %v2033, %v2025
        %v2043 = vsel %vm1169, %v2035, %v2027
        %v2044 = vld [vmem:[%s1178] sm:$0x3]
        %v2046 = vlaneseq
        %v2047 = vshrl.u32 %v2046, 7
        %v2048 = vsub.s32 0, %v2047
        %v2049 = vrot.slane %v2044, %v2048
        %v2050 = vlaneseq
        %v2051 = vshrl.u32 %v2050, 7
        %v2052 = vsub.s32 1, %v2051
        %v2053 = vrot.slane %v2044, %v2052
        %v2056 = vmul.f32 %v2005, %v2049
        %v2057 = vmul.f32 %v2007, %v2053
        %v2058 = vmul.f32 %v2009, %v2049
        %v2059 = vmul.f32 %v2011, %v2053
        %v2060 = vmul.f32 %v2013, %v2049
        %v2061 = vmul.f32 %v2015, %v2053
        %v2062 = vmul.f32 %v2017, %v2049
        %v2063 = vmul.f32 %v2019, %v2053
        %v2064 = vmul.f32 %v2056, %v2036
        %v2065 = vmul.f32 %v2057, %v2040
        %v2066 = vmul.f32 %v2058, %v2037
        %v2067 = vmul.f32 %v2059, %v2041
        %v2068 = vmul.f32 %v2060, %v2038
        %v2069 = vmul.f32 %v2061, %v2042
        %v2070 = vmul.f32 %v2062, %v2039
        %v2071 = vmul.f32 %v2063, %v2043
        %v2072 = vadd.f32 %v1972, %v2005
        %v2073 = vadd.f32 %v1973, %v2007
        %v2074 = vadd.f32 %v1974, %v2009
        %v2075 = vadd.f32 %v1975, %v2011
        %v2076 = vadd.f32 %v1976, %v2013
        %v2077 = vadd.f32 %v1977, %v2015
        %v2078 = vadd.f32 %v1978, %v2017
        %v2079 = vadd.f32 %v1979, %v2019
        %v2080 = vadd.f32 %v1980, %v2064
        %v2081 = vadd.f32 %v1981, %v2065
        %v2082 = vadd.f32 %v1982, %v2066
        %v2083 = vadd.f32 %v1983, %v2067
        %v2084 = vadd.f32 %v1984, %v2068
        %v2085 = vadd.f32 %v1985, %v2069
        %v2086 = vadd.f32 %v1986, %v2070
        %v2087 = vadd.f32 %v1987, %v2071
        %v2088 = vrcp.pop %v2072
        %v2089 = vrcp.pop %v2073
        %v2090 = vrcp.pop %v2074
        %v2091 = vrcp.pop %v2075
        %v2092 = vrcp.pop %v2076
        %v2093 = vrcp.pop %v2077
        %v2094 = vrcp.pop %v2078
        %v2095 = vrcp.pop %v2079
        %v2096 = vmul.f32 %v2072, %v2088
        %v2097 = vmul.f32 %v2073, %v2089
        %v2098 = vmul.f32 %v2074, %v2090
        %v2099 = vmul.f32 %v2075, %v2091
        %v2100 = vmul.f32 %v2076, %v2092
        %v2101 = vmul.f32 %v2077, %v2093
        %v2102 = vmul.f32 %v2078, %v2094
        %v2103 = vmul.f32 %v2079, %v2095
        %v2104 = vsub.f32 2.0, %v2096
        %v2105 = vsub.f32 2.0, %v2097
        %v2106 = vsub.f32 2.0, %v2098
        %v2107 = vsub.f32 2.0, %v2099
        %v2108 = vsub.f32 2.0, %v2100
        %v2109 = vsub.f32 2.0, %v2101
        %v2110 = vsub.f32 2.0, %v2102
        %v2111 = vsub.f32 2.0, %v2103
        %v2112 = vmul.f32 %v2088, %v2104
        %v2113 = vmul.f32 %v2089, %v2105
        %v2114 = vmul.f32 %v2090, %v2106
        %v2115 = vmul.f32 %v2091, %v2107
        %v2116 = vmul.f32 %v2092, %v2108
        %v2117 = vmul.f32 %v2093, %v2109
        %v2118 = vmul.f32 %v2094, %v2110
        %v2119 = vmul.f32 %v2095, %v2111
        %v2120 = vmul.f32 %v2080, %v2112
        %v2121 = vmul.f32 %v2081, %v2113
        %v2122 = vmul.f32 %v2082, %v2114
        %v2123 = vmul.f32 %v2083, %v2115
        %v2124 = vmul.f32 %v2084, %v2116
        %v2125 = vmul.f32 %v2085, %v2117
        %v2126 = vmul.f32 %v2086, %v2118
        %v2127 = vmul.f32 %v2087, %v2119
        %2128 = vst [vmem:[%s234] sm:$0xff] %v2120
        %2129 = vst [vmem:[%s234 + $0x8] sm:$0xff] %v2121
        %2130 = vst [vmem:[%s234 + $0x10] sm:$0xff] %v2122
        %2131 = vst [vmem:[%s234 + $0x18] sm:$0xff] %v2123
        %2132 = vst [vmem:[%s234 + $0x20] sm:$0xff] %v2124
        %2133 = vst [vmem:[%s234 + $0x28] sm:$0xff] %v2125
        %2134 = vst [vmem:[%s234 + $0x30] sm:$0xff] %v2126
        %2135 = vst [vmem:[%s234 + $0x38] sm:$0xff] %v2127
        %s2136 = sand.u32 %s139, 1
        %s2137 = scalar_lea.sflag [#allocation4], %s2136
        %s2138 = sand.u32 %s139, 1
        %s2139 = smul.addr %s2138, 64
        %s2140 = scalar_lea.vmem [#allocation3], %s2139
        // Predicated region
        $region37: #{tpu_custom_call.1} parent=35 // pred_check
          %p2141 = pneg %p149
        $region38: #{tpu_custom_call.1} parent=35 // pred_check_branch
          %2143 = sbr.rel (%p2141) target = $region40
        $region39: #{tpu_custom_call.1} parent=35 // pred_region
          %s2144 = smul.u32 4, %s23
          %s2146 = ssub.s32 1024, 1024
          %2147 = vsyncadd %s2137, %s2146
          %s2148 = smul.addr %s2144, 2
          %s2149 = smul.addr %s22, 8
          %s2150 = sadd.s32 %s2148, %s2149
          %s2151 = smul.addr %s2150, 128
          %s2152 = scalar_lea.hbm %s4, %s2151
          %s2153 = sshll.u32 %s2140, 4
          %s2154 = int_to_ptr.vmem [resolvable:$true] %s2153
          %2159 = dma.vmem_to_hbm [thread:$0]  %s2154, 1024, %s2152, %s2137, 256, 256, 16
        $region40: #{tpu_custom_call.1} parent=35 // pred_fallthru
          _
      $region36: #{tpu_custom_call.1} parent=5 // pred_fallthru
        _
      %p2160 = scmp.le.s32.totalorder 2, %s13
      // Predicated region
      $region41: #{tpu_custom_call.1} parent=5 // pred_check
        %p2161 = pneg %p2160
      $region42: #{tpu_custom_call.1} parent=5 // pred_check_branch
        %2163 = sbr.rel (%p2161) target = $region44
      $region43: #{tpu_custom_call.1} parent=5 // pred_region
        %s2164 = ssub.s32 %s13, 2
        // Predicated region
        $region45: #{tpu_custom_call.1} parent=43 // pred_check
          %p2165 = pneg %p155
        $region46: #{tpu_custom_call.1} parent=43 // pred_check_branch
          %2167 = sbr.rel (%p2165) target = $region48
        $region47: #{tpu_custom_call.1} parent=43 // pred_region
          %s2168 = sand.u32 %s140, 1
          %s2169 = scalar_lea.sflag [#allocation4], %s2168
          %s2170 = sand.u32 %s140, 1
          %s2171 = smul.addr %s2170, 64
          %s2172 = scalar_lea.vmem [#allocation3], %s2171
          %2173 = dma.done %s2169, 1024
        $region48: #{tpu_custom_call.1} parent=43 // pred_fallthru
          _
      $region44: #{tpu_custom_call.1} parent=5 // pred_fallthru
        _
    $region6: #{tpu_custom_call.1} parent=1 // loop_footer
      %s17 = sadd.s32 1, %s13
    $region7: #{tpu_custom_call.1} parent=1 // loop_footer_branch
      %12 = sbr.rel target = $region3
    $region8: #{tpu_custom_call.1} parent=1 // loop_exit
      _
    %2174 = vsyncpa [#allocation4], 1
    %s2175 = scalar_lea.sflag [#allocation4], 1
    %2176 = vsyncpa %s2175, 1

</llo_original>
